<compile_context>
chip_gen: v7x
topology: tpu7x:2x2x1
jax: 0.10.0
libtpu: 0.0.40
codegen_flags: <defaults>
</compile_context>

<pallas_src>
import functools

import jax
import jax.numpy as jnp
import numpy as np
from jax.experimental import pallas as pl
from jax.experimental.pallas import tpu as pltpu

E = 100        # embedding dim (in_channels of the convs)
C_PAD = 128    # lane-padded channel dim


def _round_up(x, m):
    return (x + m - 1) // m * m


# ----------------------------------------------------------------------------
# Kernel: conv taps via MXU matmul, tap alignment, masked max-pool over the
# concatenated (static ++ change) length axis, Linear(3,2) + softmax epilogue.
# ----------------------------------------------------------------------------
def _model_kernel(x_ref, w_ref, s_ref, m_ref, scal_ref, out_ref, *, seq_len):
    # x_ref   : (B_TILE, 2*Lp8, C_PAD) f32  per batch row: [static ; change],
    #                                       each branch zero-padded (conv pad=1
    #                                       + alignment to a multiple of 8).
    # w_ref   : (C_PAD, 128) f32  12 conv taps packed in columns 0..11.
    # s_ref   : (128, 128)   f32  tap-column -> kernel segment-sum matrix.
    # m_ref   : (8, 128)     f32  row d = lane mask of taps with offset d.
    # scal_ref: (16,) f32 SMEM    [b3,b4,b5, wl00,wl01,wl02, wl10,wl11,wl12, bl0,bl1].
    # out_ref : (B_TILE, 128) f32 lanes 0/1 = softmax probabilities.
    bt, lg, c = x_ref.shape
    lp8 = lg // 2
    rows = bt * lg

    # (1) every conv tap response at every position with one MXU matmul.
    x = x_ref[...].reshape(rows, c)                     # layout-preserving (lg % 8 == 0)
    y = jnp.dot(x, w_ref[...], preferred_element_type=jnp.float32)   # (rows, 128)

    # (2) align taps to their output position: a[r, c] = y[r + tap_offset(c), c].
    #     Four shared static row-shifts of the small tap-response tensor; rows
    #     whose shift crosses a branch/batch boundary are masked out in (4).
    a = y * m_ref[0, :]
    for d in range(1, 5):
        shifted = jnp.concatenate(
            [y[d:, :], jnp.zeros((d, y.shape[1]), jnp.float32)], axis=0)
        a = a + shifted * m_ref[d, :]

    # (3) per-kernel tap sums -> lanes 0/1/2 = conv3/conv4/conv5 (tiny matmul).
    convs = jnp.dot(a, s_ref[...], preferred_element_type=jnp.float32)

    # (4) mask invalid positions (L_out(k) = L + 3 - k, k = lane + 3) and
    #     max-pool over the concatenated static++change length axis.
    convs = convs.reshape(bt, lg, 128)
    pos = jax.lax.broadcasted_iota(jnp.int32, (bt, lg, 128), 1)
    pos = jnp.where(pos >= lp8, pos - lp8, pos)          # position within branch
    lane = jax.lax.broadcasted_iota(jnp.int32, (bt, lg, 128), 2)
    masked = jnp.where(pos < (seq_len - lane), convs, jnp.float32(-1e30))
    pooled = jnp.max(masked, axis=1)                     # (B_TILE, 128)

    # (5) conv bias + Linear(3, 2) + softmax on tiny (B_TILE, 1) slices.
    m3 = pooled[:, 0:1] + scal_ref[0]
    m4 = pooled[:, 1:2] + scal_ref[1]
    m5 = pooled[:, 2:3] + scal_ref[2]
    l0 = m3 * scal_ref[3] + m4 * scal_ref[4] + m5 * scal_ref[5] + scal_ref[9]
    l1 = m3 * scal_ref[6] + m4 * scal_ref[7] + m5 * scal_ref[8] + scal_ref[10]
    mx = jnp.maximum(l0, l1)
    e0 = jnp.exp(l0 - mx)
    e1 = jnp.exp(l1 - mx)
    inv = 1.0 / (e0 + e1)

    # (6) single lane-dense store: lanes 0/1 = the two class probabilities.
    out_lane = jax.lax.broadcasted_iota(jnp.int32, (bt, 128), 1)
    out_ref[...] = jnp.where(out_lane == 0, e0 * inv,
                             jnp.where(out_lane == 1, e1 * inv, 0.0))


# ----------------------------------------------------------------------------
# Wrapper: embedding gather + layout prep (XLA glue) + pallas_call.
# ----------------------------------------------------------------------------
def model_forward(indices, params):
    """Forward pass. `indices` is the padded token-id tensor (B, L), int32."""
    B, L = indices.shape
    if L < 3:
        raise ValueError("sequence too short for the k=5 conv (matches PyTorch)")
    Lp8 = _round_up(L + 2, 8)          # conv padding (1 each side) + sublane align

    # ---- batch tile for the pipelined grid (block kept <= ~2 MiB so double
    #      buffering + temporaries stay far under v7x's 32 MiB scoped VMEM). ---
    bytes_per_row = 2 * Lp8 * C_PAD * 4
    fit = (2 * 1024 * 1024) // bytes_per_row
    bt = max(8, (min(128, fit) // 8) * 8)
    B_TILE = min(bt, _round_up(B, 8))
    B_pad = _round_up(B, B_TILE)

    # ---- glue: embedding gather + layout prep (plain JAX) -------------------
    # TODO(synk): the row gather itself stays in XLA; fusing it into the kernel
    # via scalar-prefetched indices would remove one HBM round trip of the
    # activation but is left out here.
    def gather(table):
        t = jnp.pad(table.astype(jnp.float32), ((0, 0), (0, C_PAD - E)))
        return jnp.take(t, indices, axis=0)                    # (B, L, C_PAD)

    def place(e):
        # zero seq-pad (conv padding=1) + align to Lp8 + pad batch to B_pad.
        return jnp.pad(e, ((0, B_pad - B), (1, Lp8 - L - 1), (0, 0)))

    x_all = jnp.concatenate([place(gather(params["emb_static"])),
                             place(gather(params["emb_change"]))], axis=1)
    # x_all: (B_pad, 2*Lp8, C_PAD)

    # ---- pack conv taps / segment-sum matrix / tap-offset lane masks --------
    w_taps = np.zeros((C_PAD, 128), np.float32)
    s_mat = np.zeros((128, 128), np.float32)
    t_mask = np.zeros((8, 128), np.float32)
    col = 0
    for ki, w in enumerate((params["w3"], params["w4"], params["w5"])):
        w = np.asarray(w, np.float32)            # (1, E, k)
        k = w.shape[2]
        w_taps[:E, col:col + k] = w[0]           # channels x taps
        s_mat[col:col + k, ki] = 1.0
        for dk in range(k):
            t_mask[dk, col + dk] = 1.0
        col += k

    # ---- epilogue scalars (conv biases + Linear(3,2)) in SMEM ---------------
    scal = np.zeros((16,), np.float32)
    scal[0] = float(params["b3"][0])
    scal[1] = float(params["b4"][0])
    scal[2] = float(params["b5"][0])
    wl = np.asarray(params["wl"], np.float32)
    bl = np.asarray(params["bl"], np.float32)
    scal[3:6] = wl[0]
    scal[6:9] = wl[1]
    scal[9] = bl[0]
    scal[10] = bl[1]

    grid = (B_pad // B_TILE,)
    out = pl.pallas_call(
        functools.partial(_model_kernel, seq_len=L),
        out_shape=jax.ShapeDtypeStruct((B_pad, 128), jnp.float32),
        grid=grid,
        in_specs=[
            pl.BlockSpec((B_TILE, 2 * Lp8, C_PAD), lambda i: (i, 0, 0)),
            pl.BlockSpec((C_PAD, 128), lambda i: (0, 0)),
            pl.BlockSpec((128, 128), lambda i: (0, 0)),
            pl.BlockSpec((8, 128), lambda i: (0, 0)),
            pl.BlockSpec(memory_space=pltpu.MemorySpace.SMEM),
        ],
        out_specs=pl.BlockSpec((B_TILE, 128), lambda i: (i, 0)),
        compiler_params=pltpu.CompilerParams(
            dimension_semantics=("parallel",),       # batch axis -> both TCs on v7x
            vmem_limit_bytes=32 * 1024 * 1024),
    )(x_all, jnp.asarray(w_taps), jnp.asarray(s_mat), jnp.asarray(t_mask),
      jnp.asarray(scal))

    return out[:B, :2]


# ----------------------------------------------------------------------------
# Pure-JAX reference (mirrors the PyTorch forward exactly) for validation.
# ----------------------------------------------------------------------------
def reference_forward(indices, params):
    hp = jax.lax.Precision.HIGHEST

    def conv(x_ncl, w, b):
        y = jax.lax.conv_general_dilated(
            x_ncl, w, window_strides=(1,), padding=[(1, 1)],
            dimension_numbers=("NCH", "OIH", "NCH"), precision=hp)
        return y + b.reshape(1, -1, 1)

    xs = jnp.take(params["emb_static"], indices, axis=0).transpose(0, 2, 1)
    xc = jnp.take(params["emb_change"], indices, axis=0).transpose(0, 2, 1)

    pooled = []
    for w, b in [(params["w3"], params["b3"]),
                 (params["w4"], params["b4"]),
                 (params["w5"], params["b5"])]:
        y = jnp.concatenate([conv(xs, w, b), conv(xc, w, b)], axis=2)
        pooled.append(jnp.max(y, axis=2))                  # (B, 1)
    feats = jnp.concatenate(pooled, axis=1)                # (B, 3)
    logits = jnp.matmul(feats, params["wl"].T, precision=hp) + params["bl"]
    return jax.nn.softmax(logits, axis=1)


# ----------------------------------------------------------------------------
if __name__ == "__main__":
    key = jax.random.PRNGKey(0)
    keys = jax.random.split(key, 10)

    VOCAB = 50   # synthetic vocab size
    B, L = 2, 8  # batch, padded sequence length

    # Deterministic synthetic parameters (shapes match the nn.Module __init__).
    word_vecs = jax.random.uniform(keys[0], (VOCAB, E), minval=-0.25, maxval=0.25,
                                   dtype=jnp.float32)
    params = {
        # both embeddings are initialized from the same pretrained table
        "emb_static": word_vecs,
        "emb_change": word_vecs,
        # Conv1d weights in PyTorch layout (out=1, in=100, k)
        "w3": jax.random.uniform(keys[1], (1, E, 3), minval=-0.06, maxval=0.06, dtype=jnp.float32),
        "b3": jax.random.uniform(keys[2], (1,), minval=-0.06, maxval=0.06, dtype=jnp.float32),
        "w4": jax.random.uniform(keys[3], (1, E, 4), minval=-0.05, maxval=0.05, dtype=jnp.float32),
        "b4": jax.random.uniform(keys[4], (1,), minval=-0.05, maxval=0.05, dtype=jnp.float32),
        "w5": jax.random.uniform(keys[5], (1, E, 5), minval=-0.045, maxval=0.045, dtype=jnp.float32),
        "b5": jax.random.uniform(keys[6], (1,), minval=-0.045, maxval=0.045, dtype=jnp.float32),
        # Linear(3, 2)
        "wl": jax.random.uniform(keys[7], (2, 3), minval=-0.577, maxval=0.577, dtype=jnp.float32),
        "bl": jax.random.uniform(keys[8], (2,), minval=-0.577, maxval=0.577, dtype=jnp.float32),
    }

    # Synthetic padded token indices (`source_padded` in the module; the
    # string->index/pad preprocessing is host-side Python, not kernel work).
    source_padded = jax.random.randint(keys[9], (B, L), 0, VOCAB, dtype=jnp.int32)

    out = model_forward(source_padded, params)
    out = jax.block_until_ready(out)

    ref = jax.block_until_ready(reference_forward(source_padded, params))
    np.testing.assert_allclose(np.asarray(out), np.asarray(ref), rtol=2e-3, atol=2e-4)

    # TODO(synk): nn.Dropout(0.5) is defined but never applied in forward(), so
    # it is intentionally omitted here.
    print("KERNEL_OK")
</pallas_src>

<mosaic_0001>
module attributes {stable_mosaic.version = 11 : i64} {
  func.func @_model_kernel(%arg0: i32, %arg1: memref<8x32x128xf32, #tpu.memory_space<vmem>>, %arg2: memref<128x128xf32, #tpu.memory_space<vmem>>, %arg3: memref<128x128xf32, #tpu.memory_space<vmem>>, %arg4: memref<8x128xf32, #tpu.memory_space<vmem>>, %arg5: memref<16xf32, #tpu.memory_space<smem>>, %arg6: memref<8x128xf32, #tpu.memory_space<vmem>>) attributes {dimension_semantics = [#tpu.dimension_semantics<parallel>], iteration_bounds = array<i64: 1>, scalar_prefetch = 0 : i64, scratch_operands = 0 : i64, tpu.core_type = #tpu.core_type<tc>, window_params = [{transform_indices = @transform_0, window_bounds = array<i64: 8, 32, 128>}, {pipeline_mode = #tpu.pipeline_mode<synchronous>, transform_indices = @transform_1, window_bounds = array<i64: 128, 128>}, {pipeline_mode = #tpu.pipeline_mode<synchronous>, transform_indices = @transform_2, window_bounds = array<i64: 128, 128>}, {pipeline_mode = #tpu.pipeline_mode<synchronous>, transform_indices = @transform_3, window_bounds = array<i64: 8, 128>}, {transform_indices = @transform_4, window_bounds = array<i64: 16>}, {transform_indices = @transform_5, window_bounds = array<i64: 8, 128>}]} {
    %c0 = arith.constant 0 : index
    %c0_0 = arith.constant 0 : index
    %c0_1 = arith.constant 0 : index
    %0 = vector.load %arg1[%c0, %c0_0, %c0_1] : memref<8x32x128xf32, #tpu.memory_space<vmem>>, vector<8x32x128xf32>
    %1 = vector.shape_cast %0 : vector<8x32x128xf32> to vector<256x128xf32>
    %c0_2 = arith.constant 0 : index
    %c0_3 = arith.constant 0 : index
    %2 = vector.load %arg2[%c0_2, %c0_3] : memref<128x128xf32, #tpu.memory_space<vmem>>, vector<128x128xf32>
    %cst = arith.constant dense<0.000000e+00> : vector<256x128xf32>
    %3 = tpu.matmul %1, %2, %cst {dimension_numbers = #tpu.dot_dimension_numbers<[1], [0], [0], [1], [0, 0, 1, 1], [], []>} : vector<256x128xf32>, vector<128x128xf32>, vector<256x128xf32> -> vector<256x128xf32>
    %c0_4 = arith.constant 0 : index
    %c0_5 = arith.constant 0 : index
    %4 = vector.load %arg4[%c0_4, %c0_5] : memref<8x128xf32, #tpu.memory_space<vmem>>, vector<1x128xf32>
    %5 = vector.shape_cast %4 : vector<1x128xf32> to vector<128xf32>
    %6 = vector.shape_cast %5 : vector<128xf32> to vector<1x128xf32>
    %7 = vector.broadcast %6 : vector<1x128xf32> to vector<256x128xf32>
    %8 = arith.mulf %3, %7 : vector<256x128xf32>
    %9 = vector.extract_strided_slice %3 {offsets = [1, 0], sizes = [255, 128], strides = [1, 1]} : vector<256x128xf32> to vector<255x128xf32>
    %cst_6 = arith.constant 0.000000e+00 : f32
    %10 = vector.broadcast %cst_6 : f32 to vector<1x128xf32>
    %11 = tpu.concatenate %9, %10 in 0 : vector<255x128xf32>, vector<1x128xf32> -> vector<256x128xf32>
    %c1 = arith.constant 1 : index
    %c0_7 = arith.constant 0 : index
    %12 = vector.load %arg4[%c1, %c0_7] : memref<8x128xf32, #tpu.memory_space<vmem>>, vector<1x128xf32>
    %13 = vector.shape_cast %12 : vector<1x128xf32> to vector<128xf32>
    %14 = vector.shape_cast %13 : vector<128xf32> to vector<1x128xf32>
    %15 = vector.broadcast %14 : vector<1x128xf32> to vector<256x128xf32>
    %16 = arith.mulf %11, %15 : vector<256x128xf32>
    %17 = arith.addf %8, %16 : vector<256x128xf32>
    %18 = vector.extract_strided_slice %3 {offsets = [2, 0], sizes = [254, 128], strides = [1, 1]} : vector<256x128xf32> to vector<254x128xf32>
    %cst_8 = arith.constant 0.000000e+00 : f32
    %19 = vector.broadcast %cst_8 : f32 to vector<2x128xf32>
    %20 = tpu.concatenate %18, %19 in 0 : vector<254x128xf32>, vector<2x128xf32> -> vector<256x128xf32>
    %c2 = arith.constant 2 : index
    %c0_9 = arith.constant 0 : index
    %21 = vector.load %arg4[%c2, %c0_9] : memref<8x128xf32, #tpu.memory_space<vmem>>, vector<1x128xf32>
    %22 = vector.shape_cast %21 : vector<1x128xf32> to vector<128xf32>
    %23 = vector.shape_cast %22 : vector<128xf32> to vector<1x128xf32>
    %24 = vector.broadcast %23 : vector<1x128xf32> to vector<256x128xf32>
    %25 = arith.mulf %20, %24 : vector<256x128xf32>
    %26 = arith.addf %17, %25 : vector<256x128xf32>
    %27 = vector.extract_strided_slice %3 {offsets = [3, 0], sizes = [253, 128], strides = [1, 1]} : vector<256x128xf32> to vector<253x128xf32>
    %cst_10 = arith.constant 0.000000e+00 : f32
    %28 = vector.broadcast %cst_10 : f32 to vector<3x128xf32>
    %29 = tpu.concatenate %27, %28 in 0 : vector<253x128xf32>, vector<3x128xf32> -> vector<256x128xf32>
    %c3 = arith.constant 3 : index
    %c0_11 = arith.constant 0 : index
    %30 = vector.load %arg4[%c3, %c0_11] : memref<8x128xf32, #tpu.memory_space<vmem>>, vector<1x128xf32>
    %31 = vector.shape_cast %30 : vector<1x128xf32> to vector<128xf32>
    %32 = vector.shape_cast %31 : vector<128xf32> to vector<1x128xf32>
    %33 = vector.broadcast %32 : vector<1x128xf32> to vector<256x128xf32>
    %34 = arith.mulf %29, %33 : vector<256x128xf32>
    %35 = arith.addf %26, %34 : vector<256x128xf32>
    %36 = vector.extract_strided_slice %3 {offsets = [4, 0], sizes = [252, 128], strides = [1, 1]} : vector<256x128xf32> to vector<252x128xf32>
    %cst_12 = arith.constant 0.000000e+00 : f32
    %37 = vector.broadcast %cst_12 : f32 to vector<4x128xf32>
    %38 = tpu.concatenate %36, %37 in 0 : vector<252x128xf32>, vector<4x128xf32> -> vector<256x128xf32>
    %c4 = arith.constant 4 : index
    %c0_13 = arith.constant 0 : index
    %39 = vector.load %arg4[%c4, %c0_13] : memref<8x128xf32, #tpu.memory_space<vmem>>, vector<1x128xf32>
    %40 = vector.shape_cast %39 : vector<1x128xf32> to vector<128xf32>
    %41 = vector.shape_cast %40 : vector<128xf32> to vector<1x128xf32>
    %42 = vector.broadcast %41 : vector<1x128xf32> to vector<256x128xf32>
    %43 = arith.mulf %38, %42 : vector<256x128xf32>
    %44 = arith.addf %35, %43 : vector<256x128xf32>
    %c0_14 = arith.constant 0 : index
    %c0_15 = arith.constant 0 : index
    %45 = vector.load %arg3[%c0_14, %c0_15] : memref<128x128xf32, #tpu.memory_space<vmem>>, vector<128x128xf32>
    %cst_16 = arith.constant dense<0.000000e+00> : vector<256x128xf32>
    %46 = tpu.matmul %44, %45, %cst_16 {dimension_numbers = #tpu.dot_dimension_numbers<[1], [0], [0], [1], [0, 0, 1, 1], [], []>} : vector<256x128xf32>, vector<128x128xf32>, vector<256x128xf32> -> vector<256x128xf32>
    %47 = vector.shape_cast %46 : vector<256x128xf32> to vector<8x32x128xf32>
    %48 = tpu.iota {dimensions = array<i32: 1>} : vector<8x32x128xi32>
    %c16_i32 = arith.constant 16 : i32
    %49 = vector.broadcast %c16_i32 : i32 to vector<8x32x128xi32>
    %50 = arith.cmpi sge, %48, %49 : vector<8x32x128xi32>
    %c16_i32_17 = arith.constant 16 : i32
    %51 = vector.broadcast %c16_i32_17 : i32 to vector<8x32x128xi32>
    %52 = arith.subi %48, %51 : vector<8x32x128xi32>
    %53 = arith.select %50, %52, %48 : vector<8x32x128xi1>, vector<8x32x128xi32>
    %54 = tpu.iota {dimensions = array<i32: 2>} : vector<8x32x128xi32>
    %c8_i32 = arith.constant 8 : i32
    %55 = vector.broadcast %c8_i32 : i32 to vector<8x32x128xi32>
    %56 = arith.subi %55, %54 : vector<8x32x128xi32>
    %57 = arith.cmpi slt, %53, %56 : vector<8x32x128xi32>
    %cst_18 = arith.constant -1.000000e+30 : f32
    %58 = vector.broadcast %cst_18 : f32 to vector<8x32x128xf32>
    %59 = arith.select %57, %47, %58 : vector<8x32x128xi1>, vector<8x32x128xf32>
    %cst_19 = arith.constant dense<0xFF800000> : vector<8x128xf32>
    %60 = vector.multi_reduction <maximumf>, %59, %cst_19 [1] : vector<8x32x128xf32> to vector<8x128xf32>
    %61 = vector.extract_strided_slice %60 {offsets = [0, 0], sizes = [8, 1], strides = [1, 1]} : vector<8x128xf32> to vector<8x1xf32>
    %c0_20 = arith.constant 0 : index
    %62 = memref.load %arg5[%c0_20] : memref<16xf32, #tpu.memory_space<smem>>
    %63 = vector.broadcast %62 : f32 to vector<8x1xf32>
    %64 = arith.addf %61, %63 : vector<8x1xf32>
    %65 = vector.extract_strided_slice %60 {offsets = [0, 1], sizes = [8, 1], strides = [1, 1]} : vector<8x128xf32> to vector<8x1xf32>
    %c1_21 = arith.constant 1 : index
    %66 = memref.load %arg5[%c1_21] : memref<16xf32, #tpu.memory_space<smem>>
    %67 = vector.broadcast %66 : f32 to vector<8x1xf32>
    %68 = arith.addf %65, %67 : vector<8x1xf32>
    %69 = vector.extract_strided_slice %60 {offsets = [0, 2], sizes = [8, 1], strides = [1, 1]} : vector<8x128xf32> to vector<8x1xf32>
    %c2_22 = arith.constant 2 : index
    %70 = memref.load %arg5[%c2_22] : memref<16xf32, #tpu.memory_space<smem>>
    %71 = vector.broadcast %70 : f32 to vector<8x1xf32>
    %72 = arith.addf %69, %71 : vector<8x1xf32>
    %c3_23 = arith.constant 3 : index
    %73 = memref.load %arg5[%c3_23] : memref<16xf32, #tpu.memory_space<smem>>
    %74 = vector.broadcast %73 : f32 to vector<8x1xf32>
    %75 = arith.mulf %64, %74 : vector<8x1xf32>
    %c4_24 = arith.constant 4 : index
    %76 = memref.load %arg5[%c4_24] : memref<16xf32, #tpu.memory_space<smem>>
    %77 = vector.broadcast %76 : f32 to vector<8x1xf32>
    %78 = arith.mulf %68, %77 : vector<8x1xf32>
    %79 = arith.addf %75, %78 : vector<8x1xf32>
    %c5 = arith.constant 5 : index
    %80 = memref.load %arg5[%c5] : memref<16xf32, #tpu.memory_space<smem>>
    %81 = vector.broadcast %80 : f32 to vector<8x1xf32>
    %82 = arith.mulf %72, %81 : vector<8x1xf32>
    %83 = arith.addf %79, %82 : vector<8x1xf32>
    %c9 = arith.constant 9 : index
    %84 = memref.load %arg5[%c9] : memref<16xf32, #tpu.memory_space<smem>>
    %85 = vector.broadcast %84 : f32 to vector<8x1xf32>
    %86 = arith.addf %83, %85 : vector<8x1xf32>
    %c6 = arith.constant 6 : index
    %87 = memref.load %arg5[%c6] : memref<16xf32, #tpu.memory_space<smem>>
    %88 = vector.broadcast %87 : f32 to vector<8x1xf32>
    %89 = arith.mulf %64, %88 : vector<8x1xf32>
    %c7 = arith.constant 7 : index
    %90 = memref.load %arg5[%c7] : memref<16xf32, #tpu.memory_space<smem>>
    %91 = vector.broadcast %90 : f32 to vector<8x1xf32>
    %92 = arith.mulf %68, %91 : vector<8x1xf32>
    %93 = arith.addf %89, %92 : vector<8x1xf32>
    %c8 = arith.constant 8 : index
    %94 = memref.load %arg5[%c8] : memref<16xf32, #tpu.memory_space<smem>>
    %95 = vector.broadcast %94 : f32 to vector<8x1xf32>
    %96 = arith.mulf %72, %95 : vector<8x1xf32>
    %97 = arith.addf %93, %96 : vector<8x1xf32>
    %c10 = arith.constant 10 : index
    %98 = memref.load %arg5[%c10] : memref<16xf32, #tpu.memory_space<smem>>
    %99 = vector.broadcast %98 : f32 to vector<8x1xf32>
    %100 = arith.addf %97, %99 : vector<8x1xf32>
    %101 = arith.maximumf %86, %100 : vector<8x1xf32>
    %102 = arith.subf %86, %101 : vector<8x1xf32>
    %103 = math.exp %102 : vector<8x1xf32>
    %104 = arith.subf %100, %101 : vector<8x1xf32>
    %105 = math.exp %104 : vector<8x1xf32>
    %106 = arith.addf %103, %105 : vector<8x1xf32>
    %cst_25 = arith.constant 1.000000e+00 : f32
    %107 = vector.broadcast %cst_25 : f32 to vector<8x1xf32>
    %108 = arith.divf %107, %106 : vector<8x1xf32>
    %109 = tpu.iota {dimensions = array<i32: 1>} : vector<8x128xi32>
    %c0_i32 = arith.constant 0 : i32
    %110 = vector.broadcast %c0_i32 : i32 to vector<8x128xi32>
    %111 = arith.cmpi eq, %109, %110 : vector<8x128xi32>
    %112 = arith.mulf %103, %108 : vector<8x1xf32>
    %c1_i32 = arith.constant 1 : i32
    %113 = vector.broadcast %c1_i32 : i32 to vector<8x128xi32>
    %114 = arith.cmpi eq, %109, %113 : vector<8x128xi32>
    %115 = arith.mulf %105, %108 : vector<8x1xf32>
    %cst_26 = arith.constant 0.000000e+00 : f32
    %116 = vector.shape_cast %115 : vector<8x1xf32> to vector<8x1xf32>
    %117 = vector.broadcast %116 : vector<8x1xf32> to vector<8x128xf32>
    %118 = vector.broadcast %cst_26 : f32 to vector<8x128xf32>
    %119 = arith.select %114, %117, %118 : vector<8x128xi1>, vector<8x128xf32>
    %120 = vector.shape_cast %112 : vector<8x1xf32> to vector<8x1xf32>
    %121 = vector.broadcast %120 : vector<8x1xf32> to vector<8x128xf32>
    %122 = arith.select %111, %121, %119 : vector<8x128xi1>, vector<8x128xf32>
    %c0_27 = arith.constant 0 : index
    %c0_28 = arith.constant 0 : index
    %123 = vector.load %arg6[%c0_27, %c0_28] : memref<8x128xf32, #tpu.memory_space<vmem>>, vector<8x128xf32>
    tpu.vector_store %arg6[%c0_27, %c0_28], %122 {strides = array<i32>} : memref<8x128xf32, #tpu.memory_space<vmem>>, vector<8x128xf32>,
    return
  }
  func.func @transform_0(%arg0: i32) -> (i32, i32, i32) {
    %c0_i32 = arith.constant 0 : i32
    %c0_i32_0 = arith.constant 0 : i32
    %c0_i32_1 = arith.constant 0 : i32
    return %arg0, %c0_i32, %c0_i32_0 : i32, i32, i32
  }
  func.func @transform_1(%arg0: i32) -> (i32, i32) {
    %c0_i32 = arith.constant 0 : i32
    %c0_i32_0 = arith.constant 0 : i32
    %c0_i32_1 = arith.constant 0 : i32
    return %c0_i32, %c0_i32_0 : i32, i32
  }
  func.func @transform_2(%arg0: i32) -> (i32, i32) {
    %c0_i32 = arith.constant 0 : i32
    %c0_i32_0 = arith.constant 0 : i32
    %c0_i32_1 = arith.constant 0 : i32
    return %c0_i32, %c0_i32_0 : i32, i32
  }
  func.func @transform_3(%arg0: i32) -> (i32, i32) {
    %c0_i32 = arith.constant 0 : i32
    %c0_i32_0 = arith.constant 0 : i32
    %c0_i32_1 = arith.constant 0 : i32
    return %c0_i32, %c0_i32_0 : i32, i32
  }
  func.func @transform_4(%arg0: i32) -> i32 {
    %c0_i32 = arith.constant 0 : i32
    %c0_i32_0 = arith.constant 0 : i32
    return %c0_i32 : i32
  }
  func.func @transform_5(%arg0: i32) -> (i32, i32) {
    %c0_i32 = arith.constant 0 : i32
    %c0_i32_0 = arith.constant 0 : i32
    return %arg0, %c0_i32 : i32, i32
  }
}

</mosaic_0001>

<llo_original>
// kernel: tpu_custom_call.1
$region0: #{tpu_custom_call.1}
  #allocation0 [shape = 'u32[]', space=smem, size = 0x4, offset = 0x4, fixed_abs, tag = 'smem constant byte address 0x4 - core index']
  #allocation1 [shape = 'u32[144,128]{1,0:T(1,128)}', space=vmem, size = 0x12000, scoped, tag = 'internal scratch']
  %s0 = inlined_call_operand.hbm [shape: f32[8,32,128], index: 0, kind: input, shape index: {}]
  %s1 = inlined_call_operand.hbm [shape: f32[128,128], index: 1, kind: input, shape index: {}]
  %s2 = inlined_call_operand.hbm [shape: f32[128,128], index: 2, kind: input, shape index: {}]
  %s3 = inlined_call_operand.vmem [shape: f32[8,128], index: 3, kind: input, shape index: {}]
  %s4 = inlined_call_operand.vmem [shape: f32[16], index: 4, kind: input, shape index: {}]
  %s5 = inlined_call_operand.hbm [shape: f32[8,128], index: 5, kind: output, shape index: {}]
  %s6 = sld [smem:[#allocation0]]
  $region46: #{tpu_custom_call.1} parent=0
    _
  %s8 = ssub.s32 1, %s6
  %s9 = scalar_select 0, %s8, %s6
  $region1: #{tpu_custom_call.1} parent=0
    #allocation2 [shape = 'u8[131072]{0}', space=vmem, size = 0x20000, scoped, tag = 'input window, operand 0, single buffered']
    #allocation3 [shape = 's32[1]{0}', space=sflag, size = 0x4, scoped, tag = 'scoped memory for tpu_custom_call.1']
    #allocation4 [shape = 's32[1]{0}', space=sflag, size = 0x4, scoped, tag = 'scoped memory for tpu_custom_call.1']
    #allocation5 [shape = 's32[1]{0}', space=sflag, size = 0x4, scoped, tag = 'scoped memory for tpu_custom_call.1']
    #allocation6 [shape = 'u8[65536]{0}', space=vmem, size = 0x10000, scoped, tag = 'input window, operand 1, single buffered']
    #allocation7 [shape = 's32[1]{0}', space=sflag, size = 0x4, scoped, tag = 'scoped memory for tpu_custom_call.1']
    #allocation8 [shape = 'u8[65536]{0}', space=vmem, size = 0x10000, scoped, tag = 'input window, operand 2, single buffered']
    #allocation9 [shape = 'u8[512]{0}', space=smem, size = 0x200, scoped, tag = 'input window, operand 4, single buffered']
    #allocation10 [shape = 'u8[4096]{0}', space=vmem, size = 0x1000, scoped, tag = 'output window, operand 0, single buffered']
    %10 = vsyncpa [#allocation3], 0
    %11 = vsyncpa [#allocation7], 0
    %12 = vsyncpa [#allocation5], 0
    %13 = vsyncpa [#allocation4], 0
    // Predicated region
    $region2: #{tpu_custom_call.1} parent=1 // pred_check
      _
    $region3: #{tpu_custom_call.1} parent=1 // pred_check_branch
      %15 = sbr.rel (0) target = $region5
    $region4: #{tpu_custom_call.1} parent=1 // pred_region
      %s17 = ssub.s32 4096, 4096
      %18 = vsyncadd [#allocation3], %s17
      %s19 = sshll.u32 [#allocation2], 4
      %s20 = int_to_ptr.vmem [resolvable:$true] %s19
      %25 = dma.hbm_to_vmem [thread:$0]  %s0, 4096, %s20, [#allocation3], 128, 128, 8
    $region5: #{tpu_custom_call.1} parent=1 // pred_fallthru
      _
    // Predicated region
    $region6: #{tpu_custom_call.1} parent=1 // pred_check
      _
    $region7: #{tpu_custom_call.1} parent=1 // pred_check_branch
      %27 = sbr.rel (0) target = $region9
    $region8: #{tpu_custom_call.1} parent=1 // pred_region
      %s29 = ssub.s32 2048, 2048
      %30 = vsyncadd [#allocation7], %s29
      %s31 = sshll.u32 [#allocation6], 4
      %s32 = int_to_ptr.vmem [resolvable:$true] %s31
      %37 = dma.hbm_to_vmem [thread:$0]  %s1, 2048, %s32, [#allocation7], 128, 128, 8
    $region9: #{tpu_custom_call.1} parent=1 // pred_fallthru
      _
    // Predicated region
    $region10: #{tpu_custom_call.1} parent=1 // pred_check
      _
    $region11: #{tpu_custom_call.1} parent=1 // pred_check_branch
      %39 = sbr.rel (0) target = $region13
    $region12: #{tpu_custom_call.1} parent=1 // pred_region
      %s41 = ssub.s32 2048, 2048
      %42 = vsyncadd [#allocation7], %s41
      %s43 = sshll.u32 [#allocation8], 4
      %s44 = int_to_ptr.vmem [resolvable:$true] %s43
      %49 = dma.hbm_to_vmem [thread:$0]  %s2, 2048, %s44, [#allocation7], 128, 128, 8
    $region13: #{tpu_custom_call.1} parent=1 // pred_fallthru
      _
    // Predicated region
    $region14: #{tpu_custom_call.1} parent=1 // pred_check
      _
    $region15: #{tpu_custom_call.1} parent=1 // pred_check_branch
      %51 = sbr.rel (0) target = $region17
    $region16: #{tpu_custom_call.1} parent=1 // pred_region
      _
    $region17: #{tpu_custom_call.1} parent=1 // pred_fallthru
      _
    // Predicated region
    $region18: #{tpu_custom_call.1} parent=1 // pred_check
      _
    $region19: #{tpu_custom_call.1} parent=1 // pred_check_branch
      %53 = sbr.rel (0) target = $region21
    $region20: #{tpu_custom_call.1} parent=1 // pred_region
      %s55 = ssub.s32 16, 16
      %56 = vsyncadd [#allocation5], %s55
      %s58 = sshll.u32 %s4, 4
      %s59 = int_to_ptr.vmem [resolvable:$true] %s58
      %61 = dma.vmem_to_smem %s59, 16, [#allocation9], [#allocation5]
    $region21: #{tpu_custom_call.1} parent=1 // pred_fallthru
      _
    // Predicated region
    $region22: #{tpu_custom_call.1} parent=1 // pred_check
      _
    $region23: #{tpu_custom_call.1} parent=1 // pred_check_branch
      %63 = sbr.rel (0) target = $region25
    $region24: #{tpu_custom_call.1} parent=1 // pred_region
      %64 = dma.done [#allocation3], 4096
    $region25: #{tpu_custom_call.1} parent=1 // pred_fallthru
      _
    // Predicated region
    $region26: #{tpu_custom_call.1} parent=1 // pred_check
      _
    $region27: #{tpu_custom_call.1} parent=1 // pred_check_branch
      %66 = sbr.rel (0) target = $region29
    $region28: #{tpu_custom_call.1} parent=1 // pred_region
      %67 = dma.done [#allocation7], 2048
    $region29: #{tpu_custom_call.1} parent=1 // pred_fallthru
      _
    // Predicated region
    $region30: #{tpu_custom_call.1} parent=1 // pred_check
      _
    $region31: #{tpu_custom_call.1} parent=1 // pred_check_branch
      %69 = sbr.rel (0) target = $region33
    $region32: #{tpu_custom_call.1} parent=1 // pred_region
      %70 = dma.done [#allocation7], 2048
    $region33: #{tpu_custom_call.1} parent=1 // pred_fallthru
      _
    // Predicated region
    $region34: #{tpu_custom_call.1} parent=1 // pred_check
      _
    $region35: #{tpu_custom_call.1} parent=1 // pred_check_branch
      %72 = sbr.rel (0) target = $region37
    $region36: #{tpu_custom_call.1} parent=1 // pred_region
      %73 = dma.done [#allocation5], 16
    $region37: #{tpu_custom_call.1} parent=1 // pred_fallthru
      _
    %74 = sfence
    %v75 = vld [vmem:[#allocation2] sm:$0xff]
    %v76 = vld [vmem:[#allocation2 + $0x8] sm:$0xff]
    %v77 = vld [vmem:[#allocation2 + $0x10] sm:$0xff]
    %v78 = vld [vmem:[#allocation2 + $0x18] sm:$0xff]
    %v79 = vld [vmem:[#allocation2 + $0x20] sm:$0xff]
    %v80 = vld [vmem:[#allocation2 + $0x28] sm:$0xff]
    %v81 = vld [vmem:[#allocation2 + $0x30] sm:$0xff]
    %v82 = vld [vmem:[#allocation2 + $0x38] sm:$0xff]
    %v83 = vld [vmem:[#allocation2 + $0x40] sm:$0xff]
    %v84 = vld [vmem:[#allocation2 + $0x48] sm:$0xff]
    %v85 = vld [vmem:[#allocation2 + $0x50] sm:$0xff]
    %v86 = vld [vmem:[#allocation2 + $0x58] sm:$0xff]
    %v87 = vld [vmem:[#allocation2 + $0x60] sm:$0xff]
    %v88 = vld [vmem:[#allocation2 + $0x68] sm:$0xff]
    %v89 = vld [vmem:[#allocation2 + $0x70] sm:$0xff]
    %v90 = vld [vmem:[#allocation2 + $0x78] sm:$0xff]
    %v91 = vld [vmem:[#allocation2 + $0x80] sm:$0xff]
    %v92 = vld [vmem:[#allocation2 + $0x88] sm:$0xff]
    %v93 = vld [vmem:[#allocation2 + $0x90] sm:$0xff]
    %v94 = vld [vmem:[#allocation2 + $0x98] sm:$0xff]
    %v95 = vld [vmem:[#allocation2 + $0xa0] sm:$0xff]
    %v96 = vld [vmem:[#allocation2 + $0xa8] sm:$0xff]
    %v97 = vld [vmem:[#allocation2 + $0xb0] sm:$0xff]
    %v98 = vld [vmem:[#allocation2 + $0xb8] sm:$0xff]
    %v99 = vld [vmem:[#allocation2 + $0xc0] sm:$0xff]
    %v100 = vld [vmem:[#allocation2 + $0xc8] sm:$0xff]
    %v101 = vld [vmem:[#allocation2 + $0xd0] sm:$0xff]
    %v102 = vld [vmem:[#allocation2 + $0xd8] sm:$0xff]
    %v103 = vld [vmem:[#allocation2 + $0xe0] sm:$0xff]
    %v104 = vld [vmem:[#allocation2 + $0xe8] sm:$0xff]
    %v105 = vld [vmem:[#allocation2 + $0xf0] sm:$0xff]
    %v106 = vld [vmem:[#allocation2 + $0xf8] sm:$0xff]
    %v107 = vld [vmem:[#allocation6] sm:$0xff]
    %v108 = vld [vmem:[#allocation6 + $0x8] sm:$0xff]
    %v109 = vld [vmem:[#allocation6 + $0x10] sm:$0xff]
    %v110 = vld [vmem:[#allocation6 + $0x18] sm:$0xff]
    %v111 = vld [vmem:[#allocation6 + $0x20] sm:$0xff]
    %v112 = vld [vmem:[#allocation6 + $0x28] sm:$0xff]
    %v113 = vld [vmem:[#allocation6 + $0x30] sm:$0xff]
    %v114 = vld [vmem:[#allocation6 + $0x38] sm:$0xff]
    %v115 = vld [vmem:[#allocation6 + $0x40] sm:$0xff]
    %v116 = vld [vmem:[#allocation6 + $0x48] sm:$0xff]
    %v117 = vld [vmem:[#allocation6 + $0x50] sm:$0xff]
    %v118 = vld [vmem:[#allocation6 + $0x58] sm:$0xff]
    %v119 = vld [vmem:[#allocation6 + $0x60] sm:$0xff]
    %v120 = vld [vmem:[#allocation6 + $0x68] sm:$0xff]
    %v121 = vld [vmem:[#allocation6 + $0x70] sm:$0xff]
    %v122 = vld [vmem:[#allocation6 + $0x78] sm:$0xff]
    %123 = vmatprep.subr.mxu0 0.0
    %124 = vmatpush1.msra.mxu0 %v107
    %125 = vmatprep.subr.mxu0 0.0
    %126 = vmatpush1.msra.mxu0 %v108
    %127 = vmatprep.subr.mxu0 0.0
    %128 = vmatpush1.msra.mxu0 %v109
    %129 = vmatprep.subr.mxu0 0.0
    %130 = vmatpush1.msra.mxu0 %v110
    %131 = vmatprep.subr.mxu0 0.0
    %132 = vmatpush1.msra.mxu0 %v111
    %133 = vmatprep.subr.mxu0 0.0
    %134 = vmatpush1.msra.mxu0 %v112
    %135 = vmatprep.subr.mxu0 0.0
    %136 = vmatpush1.msra.mxu0 %v113
    %137 = vmatprep.subr.mxu0 0.0
    %138 = vmatpush1.msra.mxu0 %v114
    %139 = vmatprep.subr.mxu0 0.0
    %140 = vmatpush1.msra.mxu0 %v115
    %141 = vmatprep.subr.mxu0 0.0
    %142 = vmatpush1.msra.mxu0 %v116
    %143 = vmatprep.subr.mxu0 0.0
    %144 = vmatpush1.msra.mxu0 %v117
    %145 = vmatprep.subr.mxu0 0.0
    %146 = vmatpush1.msra.mxu0 %v118
    %147 = vmatprep.subr.mxu0 0.0
    %148 = vmatpush1.msra.mxu0 %v119
    %149 = vmatprep.subr.mxu0 0.0
    %150 = vmatpush1.msra.mxu0 %v120
    %151 = vmatprep.subr.mxu0 0.0
    %152 = vmatpush1.msra.mxu0 %v121
    %153 = vmatprep.subr.mxu0 0.0
    %154 = vmatpush1.msra.mxu0 %v122
    %155 = vmatprep.subr.mxu0 0.0
    %156 = vmatpush1.msra.mxu0 0.0
    %157 = vmatprep.subr.mxu0 0.0
    %158 = vmatpush1.msra.mxu0 0.0
    %159 = vmatprep.subr.mxu0 0.0
    %160 = vmatpush1.msra.mxu0 0.0
    %161 = vmatprep.subr.mxu0 0.0
    %162 = vmatpush1.msra.mxu0 0.0
    %163 = vmatprep.subr.mxu0 0.0
    %164 = vmatpush1.msra.mxu0 0.0
    %165 = vmatprep.subr.mxu0 0.0
    %166 = vmatpush1.msra.mxu0 0.0
    %167 = vmatprep.subr.mxu0 0.0
    %168 = vmatpush1.msra.mxu0 0.0
    %169 = vmatprep.subr.mxu0 0.0
    %170 = vmatpush1.msra.mxu0 0.0
    %171 = vmatprep.subr.mxu0 0.0
    %172 = vmatpush1.msra.mxu0 0.0
    %173 = vmatprep.subr.mxu0 0.0
    %174 = vmatpush1.msra.mxu0 0.0
    %175 = vmatprep.subr.mxu0 0.0
    %176 = vmatpush1.msra.mxu0 0.0
    %177 = vmatprep.subr.mxu0 0.0
    %178 = vmatpush1.msra.mxu0 0.0
    %179 = vmatprep.subr.mxu0 0.0
    %180 = vmatpush1.msra.mxu0 0.0
    %181 = vmatprep.subr.mxu0 0.0
    %182 = vmatpush1.msra.mxu0 0.0
    %183 = vmatprep.subr.mxu0 0.0
    %184 = vmatpush1.msra.mxu0 0.0
    %185 = vmatprep.subr.mxu0 0.0
    %186 = vmatpush1.msra.mxu0 0.0
    %187 = vmatprep.mubr.f32.mxu0 0.0
    %188 = vmatmul.mubr.f32.gmra.mrb[0].mxu0 %v75
    %v189 = vpop.f32.mrb[0].mxu0
    %v190 = vadd.f32 0.0, %v189
    %v191 = vpop.f32.mrb[0].mxu0
    %192 = vmatprep.mubr.f32.mxu0 0.0
    %193 = vmatmul.mubr.f32.gmra.mrb[0].mxu0 %v76
    %v194 = vpop.f32.mrb[0].mxu0
    %v195 = vadd.f32 0.0, %v194
    %v196 = vpop.f32.mrb[0].mxu0
    %197 = vmatprep.mubr.f32.mxu0 0.0
    %198 = vmatmul.mubr.f32.gmra.mrb[0].mxu0 %v77
    %v199 = vpop.f32.mrb[0].mxu0
    %v200 = vadd.f32 0.0, %v199
    %v201 = vpop.f32.mrb[0].mxu0
    %202 = vmatprep.mubr.f32.mxu0 0.0
    %203 = vmatmul.mubr.f32.gmra.mrb[0].mxu0 %v78
    %v204 = vpop.f32.mrb[0].mxu0
    %v205 = vadd.f32 0.0, %v204
    %v206 = vpop.f32.mrb[0].mxu0
    %207 = vmatprep.mubr.f32.mxu0 0.0
    %208 = vmatmul.mubr.f32.gmra.mrb[0].mxu0 %v79
    %v209 = vpop.f32.mrb[0].mxu0
    %v210 = vadd.f32 0.0, %v209
    %v211 = vpop.f32.mrb[0].mxu0
    %212 = vmatprep.mubr.f32.mxu0 0.0
    %213 = vmatmul.mubr.f32.gmra.mrb[0].mxu0 %v80
    %v214 = vpop.f32.mrb[0].mxu0
    %v215 = vadd.f32 0.0, %v214
    %v216 = vpop.f32.mrb[0].mxu0
    %217 = vmatprep.mubr.f32.mxu0 0.0
    %218 = vmatmul.mubr.f32.gmra.mrb[0].mxu0 %v81
    %v219 = vpop.f32.mrb[0].mxu0
    %v220 = vadd.f32 0.0, %v219
    %v221 = vpop.f32.mrb[0].mxu0
    %222 = vmatprep.mubr.f32.mxu0 0.0
    %223 = vmatmul.mubr.f32.gmra.mrb[0].mxu0 %v82
    %v224 = vpop.f32.mrb[0].mxu0
    %v225 = vadd.f32 0.0, %v224
    %v226 = vpop.f32.mrb[0].mxu0
    %227 = vmatprep.mubr.f32.mxu0 0.0
    %228 = vmatmul.mubr.f32.gmra.mrb[0].mxu0 %v83
    %v229 = vpop.f32.mrb[0].mxu0
    %v230 = vadd.f32 0.0, %v229
    %v231 = vpop.f32.mrb[0].mxu0
    %232 = vmatprep.mubr.f32.mxu0 0.0
    %233 = vmatmul.mubr.f32.gmra.mrb[0].mxu0 %v84
    %v234 = vpop.f32.mrb[0].mxu0
    %v235 = vadd.f32 0.0, %v234
    %v236 = vpop.f32.mrb[0].mxu0
    %237 = vmatprep.mubr.f32.mxu0 0.0
    %238 = vmatmul.mubr.f32.gmra.mrb[0].mxu0 %v85
    %v239 = vpop.f32.mrb[0].mxu0
    %v240 = vadd.f32 0.0, %v239
    %v241 = vpop.f32.mrb[0].mxu0
    %242 = vmatprep.mubr.f32.mxu0 0.0
    %243 = vmatmul.mubr.f32.gmra.mrb[0].mxu0 %v86
    %v244 = vpop.f32.mrb[0].mxu0
    %v245 = vadd.f32 0.0, %v244
    %v246 = vpop.f32.mrb[0].mxu0
    %247 = vmatprep.mubr.f32.mxu0 0.0
    %248 = vmatmul.mubr.f32.gmra.mrb[0].mxu0 %v87
    %v249 = vpop.f32.mrb[0].mxu0
    %v250 = vadd.f32 0.0, %v249
    %v251 = vpop.f32.mrb[0].mxu0
    %252 = vmatprep.mubr.f32.mxu0 0.0
    %253 = vmatmul.mubr.f32.gmra.mrb[0].mxu0 %v88
    %v254 = vpop.f32.mrb[0].mxu0
    %v255 = vadd.f32 0.0, %v254
    %v256 = vpop.f32.mrb[0].mxu0
    %257 = vmatprep.mubr.f32.mxu0 0.0
    %258 = vmatmul.mubr.f32.gmra.mrb[0].mxu0 %v89
    %v259 = vpop.f32.mrb[0].mxu0
    %v260 = vadd.f32 0.0, %v259
    %v261 = vpop.f32.mrb[0].mxu0
    %262 = vmatprep.mubr.f32.mxu0 0.0
    %263 = vmatmul.mubr.f32.gmra.mrb[0].mxu0 %v90
    %v264 = vpop.f32.mrb[0].mxu0
    %v265 = vadd.f32 0.0, %v264
    %v266 = vpop.f32.mrb[0].mxu0
    %267 = vmatprep.mubr.f32.mxu0 0.0
    %268 = vmatmul.mubr.f32.gmra.mrb[0].mxu0 %v91
    %v269 = vpop.f32.mrb[0].mxu0
    %v270 = vadd.f32 0.0, %v269
    %v271 = vpop.f32.mrb[0].mxu0
    %272 = vmatprep.mubr.f32.mxu0 0.0
    %273 = vmatmul.mubr.f32.gmra.mrb[0].mxu0 %v92
    %v274 = vpop.f32.mrb[0].mxu0
    %v275 = vadd.f32 0.0, %v274
    %v276 = vpop.f32.mrb[0].mxu0
    %277 = vmatprep.mubr.f32.mxu0 0.0
    %278 = vmatmul.mubr.f32.gmra.mrb[0].mxu0 %v93
    %v279 = vpop.f32.mrb[0].mxu0
    %v280 = vadd.f32 0.0, %v279
    %v281 = vpop.f32.mrb[0].mxu0
    %282 = vmatprep.mubr.f32.mxu0 0.0
    %283 = vmatmul.mubr.f32.gmra.mrb[0].mxu0 %v94
    %v284 = vpop.f32.mrb[0].mxu0
    %v285 = vadd.f32 0.0, %v284
    %v286 = vpop.f32.mrb[0].mxu0
    %287 = vmatprep.mubr.f32.mxu0 0.0
    %288 = vmatmul.mubr.f32.gmra.mrb[0].mxu0 %v95
    %v289 = vpop.f32.mrb[0].mxu0
    %v290 = vadd.f32 0.0, %v289
    %v291 = vpop.f32.mrb[0].mxu0
    %292 = vmatprep.mubr.f32.mxu0 0.0
    %293 = vmatmul.mubr.f32.gmra.mrb[0].mxu0 %v96
    %v294 = vpop.f32.mrb[0].mxu0
    %v295 = vadd.f32 0.0, %v294
    %v296 = vpop.f32.mrb[0].mxu0
    %297 = vmatprep.mubr.f32.mxu0 0.0
    %298 = vmatmul.mubr.f32.gmra.mrb[0].mxu0 %v97
    %v299 = vpop.f32.mrb[0].mxu0
    %v300 = vadd.f32 0.0, %v299
    %v301 = vpop.f32.mrb[0].mxu0
    %302 = vmatprep.mubr.f32.mxu0 0.0
    %303 = vmatmul.mubr.f32.gmra.mrb[0].mxu0 %v98
    %v304 = vpop.f32.mrb[0].mxu0
    %v305 = vadd.f32 0.0, %v304
    %v306 = vpop.f32.mrb[0].mxu0
    %307 = vmatprep.mubr.f32.mxu0 0.0
    %308 = vmatmul.mubr.f32.gmra.mrb[0].mxu0 %v99
    %v309 = vpop.f32.mrb[0].mxu0
    %v310 = vadd.f32 0.0, %v309
    %v311 = vpop.f32.mrb[0].mxu0
    %312 = vmatprep.mubr.f32.mxu0 0.0
    %313 = vmatmul.mubr.f32.gmra.mrb[0].mxu0 %v100
    %v314 = vpop.f32.mrb[0].mxu0
    %v315 = vadd.f32 0.0, %v314
    %v316 = vpop.f32.mrb[0].mxu0
    %317 = vmatprep.mubr.f32.mxu0 0.0
    %318 = vmatmul.mubr.f32.gmra.mrb[0].mxu0 %v101
    %v319 = vpop.f32.mrb[0].mxu0
    %v320 = vadd.f32 0.0, %v319
    %v321 = vpop.f32.mrb[0].mxu0
    %322 = vmatprep.mubr.f32.mxu0 0.0
    %323 = vmatmul.mubr.f32.gmra.mrb[0].mxu0 %v102
    %v324 = vpop.f32.mrb[0].mxu0
    %v325 = vadd.f32 0.0, %v324
    %v326 = vpop.f32.mrb[0].mxu0
    %327 = vmatprep.mubr.f32.mxu0 0.0
    %328 = vmatmul.mubr.f32.gmra.mrb[0].mxu0 %v103
    %v329 = vpop.f32.mrb[0].mxu0
    %v330 = vadd.f32 0.0, %v329
    %v331 = vpop.f32.mrb[0].mxu0
    %332 = vmatprep.mubr.f32.mxu0 0.0
    %333 = vmatmul.mubr.f32.gmra.mrb[0].mxu0 %v104
    %v334 = vpop.f32.mrb[0].mxu0
    %v335 = vadd.f32 0.0, %v334
    %v336 = vpop.f32.mrb[0].mxu0
    %337 = vmatprep.mubr.f32.mxu0 0.0
    %338 = vmatmul.mubr.f32.gmra.mrb[0].mxu0 %v105
    %v339 = vpop.f32.mrb[0].mxu0
    %v340 = vadd.f32 0.0, %v339
    %v341 = vpop.f32.mrb[0].mxu0
    %342 = vmatprep.mubr.f32.mxu0 0.0
    %343 = vmatmul.mubr.f32.gmra.mrb[0].mxu0 %v106
    %v344 = vpop.f32.mrb[0].mxu0
    %v345 = vadd.f32 0.0, %v344
    %v346 = vpop.f32.mrb[0].mxu0
    %347 = vdwg.mxu0
    %v348 = vld [vmem:[%s3] sm:$0x1]
    %v349 = vlaneseq
    %v350 = vshrl.u32 %v349, 7
    %v351 = vsub.s32 0, %v350
    %v352 = vrot.slane %v348, %v351
    %v353 = vmul.f32 %v190, %v352
    %v354 = vmul.f32 %v195, %v352
    %v355 = vmul.f32 %v200, %v352
    %v356 = vmul.f32 %v205, %v352
    %v357 = vmul.f32 %v210, %v352
    %v358 = vmul.f32 %v215, %v352
    %v359 = vmul.f32 %v220, %v352
    %v360 = vmul.f32 %v225, %v352
    %v361 = vmul.f32 %v230, %v352
    %v362 = vmul.f32 %v235, %v352
    %v363 = vmul.f32 %v240, %v352
    %v364 = vmul.f32 %v245, %v352
    %v365 = vmul.f32 %v250, %v352
    %v366 = vmul.f32 %v255, %v352
    %v367 = vmul.f32 %v260, %v352
    %v368 = vmul.f32 %v265, %v352
    %v369 = vmul.f32 %v270, %v352
    %v370 = vmul.f32 %v275, %v352
    %v371 = vmul.f32 %v280, %v352
    %v372 = vmul.f32 %v285, %v352
    %v373 = vmul.f32 %v290, %v352
    %v374 = vmul.f32 %v295, %v352
    %v375 = vmul.f32 %v300, %v352
    %v376 = vmul.f32 %v305, %v352
    %v377 = vmul.f32 %v310, %v352
    %v378 = vmul.f32 %v315, %v352
    %v379 = vmul.f32 %v320, %v352
    %v380 = vmul.f32 %v325, %v352
    %v381 = vmul.f32 %v330, %v352
    %v382 = vmul.f32 %v335, %v352
    %v383 = vmul.f32 %v340, %v352
    %v384 = vmul.f32 %v345, %v352
    %vm417 = vcmask 1046528
    %v418 = vrot.slane %v190, 1
    %v419 = vrot.slane %v195, 1
    %v420 = vsel %vm417, %v418, %v419
    %v421 = vrot.slane %v200, 1
    %v422 = vsel %vm417, %v419, %v421
    %v423 = vrot.slane %v205, 1
    %v424 = vsel %vm417, %v421, %v423
    %v425 = vrot.slane %v210, 1
    %v426 = vsel %vm417, %v423, %v425
    %v427 = vrot.slane %v215, 1
    %v428 = vsel %vm417, %v425, %v427
    %v429 = vrot.slane %v220, 1
    %v430 = vsel %vm417, %v427, %v429
    %v431 = vrot.slane %v225, 1
    %v432 = vsel %vm417, %v429, %v431
    %v433 = vrot.slane %v230, 1
    %v434 = vsel %vm417, %v431, %v433
    %v435 = vrot.slane %v235, 1
    %v436 = vsel %vm417, %v433, %v435
    %v437 = vrot.slane %v240, 1
    %v438 = vsel %vm417, %v435, %v437
    %v439 = vrot.slane %v245, 1
    %v440 = vsel %vm417, %v437, %v439
    %v441 = vrot.slane %v250, 1
    %v442 = vsel %vm417, %v439, %v441
    %v443 = vrot.slane %v255, 1
    %v444 = vsel %vm417, %v441, %v443
    %v445 = vrot.slane %v260, 1
    %v446 = vsel %vm417, %v443, %v445
    %v447 = vrot.slane %v265, 1
    %v448 = vsel %vm417, %v445, %v447
    %v449 = vrot.slane %v270, 1
    %v450 = vsel %vm417, %v447, %v449
    %v451 = vrot.slane %v275, 1
    %v452 = vsel %vm417, %v449, %v451
    %v453 = vrot.slane %v280, 1
    %v454 = vsel %vm417, %v451, %v453
    %v455 = vrot.slane %v285, 1
    %v456 = vsel %vm417, %v453, %v455
    %v457 = vrot.slane %v290, 1
    %v458 = vsel %vm417, %v455, %v457
    %v459 = vrot.slane %v295, 1
    %v460 = vsel %vm417, %v457, %v459
    %v461 = vrot.slane %v300, 1
    %v462 = vsel %vm417, %v459, %v461
    %v463 = vrot.slane %v305, 1
    %v464 = vsel %vm417, %v461, %v463
    %v465 = vrot.slane %v310, 1
    %v466 = vsel %vm417, %v463, %v465
    %v467 = vrot.slane %v315, 1
    %v468 = vsel %vm417, %v465, %v467
    %v469 = vrot.slane %v320, 1
    %v470 = vsel %vm417, %v467, %v469
    %v471 = vrot.slane %v325, 1
    %v472 = vsel %vm417, %v469, %v471
    %v473 = vrot.slane %v330, 1
    %v474 = vsel %vm417, %v471, %v473
    %v475 = vrot.slane %v335, 1
    %v476 = vsel %vm417, %v473, %v475
    %v477 = vrot.slane %v340, 1
    %v478 = vsel %vm417, %v475, %v477
    %v479 = vrot.slane %v345, 1
    %v480 = vsel %vm417, %v477, %v479
    %v513 = vsel %vm417, %v479, 0.0
    %v514 = vld [vmem:[%s3 + $0x1] sm:$0x1]
    %v515 = vlaneseq
    %v516 = vshrl.u32 %v515, 7
    %v517 = vsub.s32 0, %v516
    %v518 = vrot.slane %v514, %v517
    %v519 = vmul.f32 %v420, %v518
    %v520 = vmul.f32 %v422, %v518
    %v521 = vmul.f32 %v424, %v518
    %v522 = vmul.f32 %v426, %v518
    %v523 = vmul.f32 %v428, %v518
    %v524 = vmul.f32 %v430, %v518
    %v525 = vmul.f32 %v432, %v518
    %v526 = vmul.f32 %v434, %v518
    %v527 = vmul.f32 %v436, %v518
    %v528 = vmul.f32 %v438, %v518
    %v529 = vmul.f32 %v440, %v518
    %v530 = vmul.f32 %v442, %v518
    %v531 = vmul.f32 %v444, %v518
    %v532 = vmul.f32 %v446, %v518
    %v533 = vmul.f32 %v448, %v518
    %v534 = vmul.f32 %v450, %v518
    %v535 = vmul.f32 %v452, %v518
    %v536 = vmul.f32 %v454, %v518
    %v537 = vmul.f32 %v456, %v518
    %v538 = vmul.f32 %v458, %v518
    %v539 = vmul.f32 %v460, %v518
    %v540 = vmul.f32 %v462, %v518
    %v541 = vmul.f32 %v464, %v518
    %v542 = vmul.f32 %v466, %v518
    %v543 = vmul.f32 %v468, %v518
    %v544 = vmul.f32 %v470, %v518
    %v545 = vmul.f32 %v472, %v518
    %v546 = vmul.f32 %v474, %v518
    %v547 = vmul.f32 %v476, %v518
    %v548 = vmul.f32 %v478, %v518
    %v549 = vmul.f32 %v480, %v518
    %v550 = vmul.f32 %v513, %v518
    %v551 = vadd.f32 %v353, %v519
    %v552 = vadd.f32 %v354, %v520
    %v553 = vadd.f32 %v355, %v521
    %v554 = vadd.f32 %v356, %v522
    %v555 = vadd.f32 %v357, %v523
    %v556 = vadd.f32 %v358, %v524
    %v557 = vadd.f32 %v359, %v525
    %v558 = vadd.f32 %v360, %v526
    %v559 = vadd.f32 %v361, %v527
    %v560 = vadd.f32 %v362, %v528
    %v561 = vadd.f32 %v363, %v529
    %v562 = vadd.f32 %v364, %v530
    %v563 = vadd.f32 %v365, %v531
    %v564 = vadd.f32 %v366, %v532
    %v565 = vadd.f32 %v367, %v533
    %v566 = vadd.f32 %v368, %v534
    %v567 = vadd.f32 %v369, %v535
    %v568 = vadd.f32 %v370, %v536
    %v569 = vadd.f32 %v371, %v537
    %v570 = vadd.f32 %v372, %v538
    %v571 = vadd.f32 %v373, %v539
    %v572 = vadd.f32 %v374, %v540
    %v573 = vadd.f32 %v375, %v541
    %v574 = vadd.f32 %v376, %v542
    %v575 = vadd.f32 %v377, %v543
    %v576 = vadd.f32 %v378, %v544
    %v577 = vadd.f32 %v379, %v545
    %v578 = vadd.f32 %v380, %v546
    %v579 = vadd.f32 %v381, %v547
    %v580 = vadd.f32 %v382, %v548
    %v581 = vadd.f32 %v383, %v549
    %v582 = vadd.f32 %v384, %v550
    %vm583 = vcmask 1045504
    %v584 = vrot.slane %v190, 2
    %v585 = vrot.slane %v195, 2
    %v586 = vsel %vm583, %v584, %v585
    %v587 = vrot.slane %v200, 2
    %v588 = vsel %vm583, %v585, %v587
    %v589 = vrot.slane %v205, 2
    %v590 = vsel %vm583, %v587, %v589
    %v591 = vrot.slane %v210, 2
    %v592 = vsel %vm583, %v589, %v591
    %v593 = vrot.slane %v215, 2
    %v594 = vsel %vm583, %v591, %v593
    %v595 = vrot.slane %v220, 2
    %v596 = vsel %vm583, %v593, %v595
    %v597 = vrot.slane %v225, 2
    %v598 = vsel %vm583, %v595, %v597
    %v599 = vrot.slane %v230, 2
    %v600 = vsel %vm583, %v597, %v599
    %v601 = vrot.slane %v235, 2
    %v602 = vsel %vm583, %v599, %v601
    %v603 = vrot.slane %v240, 2
    %v604 = vsel %vm583, %v601, %v603
    %v605 = vrot.slane %v245, 2
    %v606 = vsel %vm583, %v603, %v605
    %v607 = vrot.slane %v250, 2
    %v608 = vsel %vm583, %v605, %v607
    %v609 = vrot.slane %v255, 2
    %v610 = vsel %vm583, %v607, %v609
    %v611 = vrot.slane %v260, 2
    %v612 = vsel %vm583, %v609, %v611
    %v613 = vrot.slane %v265, 2
    %v614 = vsel %vm583, %v611, %v613
    %v615 = vrot.slane %v270, 2
    %v616 = vsel %vm583, %v613, %v615
    %v617 = vrot.slane %v275, 2
    %v618 = vsel %vm583, %v615, %v617
    %v619 = vrot.slane %v280, 2
    %v620 = vsel %vm583, %v617, %v619
    %v621 = vrot.slane %v285, 2
    %v622 = vsel %vm583, %v619, %v621
    %v623 = vrot.slane %v290, 2
    %v624 = vsel %vm583, %v621, %v623
    %v625 = vrot.slane %v295, 2
    %v626 = vsel %vm583, %v623, %v625
    %v627 = vrot.slane %v300, 2
    %v628 = vsel %vm583, %v625, %v627
    %v629 = vrot.slane %v305, 2
    %v630 = vsel %vm583, %v627, %v629
    %v631 = vrot.slane %v310, 2
    %v632 = vsel %vm583, %v629, %v631
    %v633 = vrot.slane %v315, 2
    %v634 = vsel %vm583, %v631, %v633
    %v635 = vrot.slane %v320, 2
    %v636 = vsel %vm583, %v633, %v635
    %v637 = vrot.slane %v325, 2
    %v638 = vsel %vm583, %v635, %v637
    %v639 = vrot.slane %v330, 2
    %v640 = vsel %vm583, %v637, %v639
    %v641 = vrot.slane %v335, 2
    %v642 = vsel %vm583, %v639, %v641
    %v643 = vrot.slane %v340, 2
    %v644 = vsel %vm583, %v641, %v643
    %v645 = vrot.slane %v345, 2
    %v646 = vsel %vm583, %v643, %v645
    %v679 = vsel %vm583, %v645, 0.0
    %v680 = vld [vmem:[%s3 + $0x2] sm:$0x1]
    %v681 = vlaneseq
    %v682 = vshrl.u32 %v681, 7
    %v683 = vsub.s32 0, %v682
    %v684 = vrot.slane %v680, %v683
    %v685 = vmul.f32 %v586, %v684
    %v686 = vmul.f32 %v588, %v684
    %v687 = vmul.f32 %v590, %v684
    %v688 = vmul.f32 %v592, %v684
    %v689 = vmul.f32 %v594, %v684
    %v690 = vmul.f32 %v596, %v684
    %v691 = vmul.f32 %v598, %v684
    %v692 = vmul.f32 %v600, %v684
    %v693 = vmul.f32 %v602, %v684
    %v694 = vmul.f32 %v604, %v684
    %v695 = vmul.f32 %v606, %v684
    %v696 = vmul.f32 %v608, %v684
    %v697 = vmul.f32 %v610, %v684
    %v698 = vmul.f32 %v612, %v684
    %v699 = vmul.f32 %v614, %v684
    %v700 = vmul.f32 %v616, %v684
    %v701 = vmul.f32 %v618, %v684
    %v702 = vmul.f32 %v620, %v684
    %v703 = vmul.f32 %v622, %v684
    %v704 = vmul.f32 %v624, %v684
    %v705 = vmul.f32 %v626, %v684
    %v706 = vmul.f32 %v628, %v684
    %v707 = vmul.f32 %v630, %v684
    %v708 = vmul.f32 %v632, %v684
    %v709 = vmul.f32 %v634, %v684
    %v710 = vmul.f32 %v636, %v684
    %v711 = vmul.f32 %v638, %v684
    %v712 = vmul.f32 %v640, %v684
    %v713 = vmul.f32 %v642, %v684
    %v714 = vmul.f32 %v644, %v684
    %v715 = vmul.f32 %v646, %v684
    %v716 = vmul.f32 %v679, %v684
    %v717 = vadd.f32 %v551, %v685
    %v718 = vadd.f32 %v552, %v686
    %v719 = vadd.f32 %v553, %v687
    %v720 = vadd.f32 %v554, %v688
    %v721 = vadd.f32 %v555, %v689
    %v722 = vadd.f32 %v556, %v690
    %v723 = vadd.f32 %v557, %v691
    %v724 = vadd.f32 %v558, %v692
    %v725 = vadd.f32 %v559, %v693
    %v726 = vadd.f32 %v560, %v694
    %v727 = vadd.f32 %v561, %v695
    %v728 = vadd.f32 %v562, %v696
    %v729 = vadd.f32 %v563, %v697
    %v730 = vadd.f32 %v564, %v698
    %v731 = vadd.f32 %v565, %v699
    %v732 = vadd.f32 %v566, %v700
    %v733 = vadd.f32 %v567, %v701
    %v734 = vadd.f32 %v568, %v702
    %v735 = vadd.f32 %v569, %v703
    %v736 = vadd.f32 %v570, %v704
    %v737 = vadd.f32 %v571, %v705
    %v738 = vadd.f32 %v572, %v706
    %v739 = vadd.f32 %v573, %v707
    %v740 = vadd.f32 %v574, %v708
    %v741 = vadd.f32 %v575, %v709
    %v742 = vadd.f32 %v576, %v710
    %v743 = vadd.f32 %v577, %v711
    %v744 = vadd.f32 %v578, %v712
    %v745 = vadd.f32 %v579, %v713
    %v746 = vadd.f32 %v580, %v714
    %v747 = vadd.f32 %v581, %v715
    %v748 = vadd.f32 %v582, %v716
    %vm749 = vcmask 1044480
    %v750 = vrot.slane %v190, 3
    %v751 = vrot.slane %v195, 3
    %v752 = vsel %vm749, %v750, %v751
    %v753 = vrot.slane %v200, 3
    %v754 = vsel %vm749, %v751, %v753
    %v755 = vrot.slane %v205, 3
    %v756 = vsel %vm749, %v753, %v755
    %v757 = vrot.slane %v210, 3
    %v758 = vsel %vm749, %v755, %v757
    %v759 = vrot.slane %v215, 3
    %v760 = vsel %vm749, %v757, %v759
    %v761 = vrot.slane %v220, 3
    %v762 = vsel %vm749, %v759, %v761
    %v763 = vrot.slane %v225, 3
    %v764 = vsel %vm749, %v761, %v763
    %v765 = vrot.slane %v230, 3
    %v766 = vsel %vm749, %v763, %v765
    %v767 = vrot.slane %v235, 3
    %v768 = vsel %vm749, %v765, %v767
    %v769 = vrot.slane %v240, 3
    %v770 = vsel %vm749, %v767, %v769
    %v771 = vrot.slane %v245, 3
    %v772 = vsel %vm749, %v769, %v771
    %v773 = vrot.slane %v250, 3
    %v774 = vsel %vm749, %v771, %v773
    %v775 = vrot.slane %v255, 3
    %v776 = vsel %vm749, %v773, %v775
    %v777 = vrot.slane %v260, 3
    %v778 = vsel %vm749, %v775, %v777
    %v779 = vrot.slane %v265, 3
    %v780 = vsel %vm749, %v777, %v779
    %v781 = vrot.slane %v270, 3
    %v782 = vsel %vm749, %v779, %v781
    %v783 = vrot.slane %v275, 3
    %v784 = vsel %vm749, %v781, %v783
    %v785 = vrot.slane %v280, 3
    %v786 = vsel %vm749, %v783, %v785
    %v787 = vrot.slane %v285, 3
    %v788 = vsel %vm749, %v785, %v787
    %v789 = vrot.slane %v290, 3
    %v790 = vsel %vm749, %v787, %v789
    %v791 = vrot.slane %v295, 3
    %v792 = vsel %vm749, %v789, %v791
    %v793 = vrot.slane %v300, 3
    %v794 = vsel %vm749, %v791, %v793
    %v795 = vrot.slane %v305, 3
    %v796 = vsel %vm749, %v793, %v795
    %v797 = vrot.slane %v310, 3
    %v798 = vsel %vm749, %v795, %v797
    %v799 = vrot.slane %v315, 3
    %v800 = vsel %vm749, %v797, %v799
    %v801 = vrot.slane %v320, 3
    %v802 = vsel %vm749, %v799, %v801
    %v803 = vrot.slane %v325, 3
    %v804 = vsel %vm749, %v801, %v803
    %v805 = vrot.slane %v330, 3
    %v806 = vsel %vm749, %v803, %v805
    %v807 = vrot.slane %v335, 3
    %v808 = vsel %vm749, %v805, %v807
    %v809 = vrot.slane %v340, 3
    %v810 = vsel %vm749, %v807, %v809
    %v811 = vrot.slane %v345, 3
    %v812 = vsel %vm749, %v809, %v811
    %v845 = vsel %vm749, %v811, 0.0
    %v846 = vld [vmem:[%s3 + $0x3] sm:$0x1]
    %v847 = vlaneseq
    %v848 = vshrl.u32 %v847, 7
    %v849 = vsub.s32 0, %v848
    %v850 = vrot.slane %v846, %v849
    %v851 = vmul.f32 %v752, %v850
    %v852 = vmul.f32 %v754, %v850
    %v853 = vmul.f32 %v756, %v850
    %v854 = vmul.f32 %v758, %v850
    %v855 = vmul.f32 %v760, %v850
    %v856 = vmul.f32 %v762, %v850
    %v857 = vmul.f32 %v764, %v850
    %v858 = vmul.f32 %v766, %v850
    %v859 = vmul.f32 %v768, %v850
    %v860 = vmul.f32 %v770, %v850
    %v861 = vmul.f32 %v772, %v850
    %v862 = vmul.f32 %v774, %v850
    %v863 = vmul.f32 %v776, %v850
    %v864 = vmul.f32 %v778, %v850
    %v865 = vmul.f32 %v780, %v850
    %v866 = vmul.f32 %v782, %v850
    %v867 = vmul.f32 %v784, %v850
    %v868 = vmul.f32 %v786, %v850
    %v869 = vmul.f32 %v788, %v850
    %v870 = vmul.f32 %v790, %v850
    %v871 = vmul.f32 %v792, %v850
    %v872 = vmul.f32 %v794, %v850
    %v873 = vmul.f32 %v796, %v850
    %v874 = vmul.f32 %v798, %v850
    %v875 = vmul.f32 %v800, %v850
    %v876 = vmul.f32 %v802, %v850
    %v877 = vmul.f32 %v804, %v850
    %v878 = vmul.f32 %v806, %v850
    %v879 = vmul.f32 %v808, %v850
    %v880 = vmul.f32 %v810, %v850
    %v881 = vmul.f32 %v812, %v850
    %v882 = vmul.f32 %v845, %v850
    %v883 = vadd.f32 %v717, %v851
    %v884 = vadd.f32 %v718, %v852
    %v885 = vadd.f32 %v719, %v853
    %v886 = vadd.f32 %v720, %v854
    %v887 = vadd.f32 %v721, %v855
    %v888 = vadd.f32 %v722, %v856
    %v889 = vadd.f32 %v723, %v857
    %v890 = vadd.f32 %v724, %v858
    %v891 = vadd.f32 %v725, %v859
    %v892 = vadd.f32 %v726, %v860
    %v893 = vadd.f32 %v727, %v861
    %v894 = vadd.f32 %v728, %v862
    %v895 = vadd.f32 %v729, %v863
    %v896 = vadd.f32 %v730, %v864
    %v897 = vadd.f32 %v731, %v865
    %v898 = vadd.f32 %v732, %v866
    %v899 = vadd.f32 %v733, %v867
    %v900 = vadd.f32 %v734, %v868
    %v901 = vadd.f32 %v735, %v869
    %v902 = vadd.f32 %v736, %v870
    %v903 = vadd.f32 %v737, %v871
    %v904 = vadd.f32 %v738, %v872
    %v905 = vadd.f32 %v739, %v873
    %v906 = vadd.f32 %v740, %v874
    %v907 = vadd.f32 %v741, %v875
    %v908 = vadd.f32 %v742, %v876
    %v909 = vadd.f32 %v743, %v877
    %v910 = vadd.f32 %v744, %v878
    %v911 = vadd.f32 %v745, %v879
    %v912 = vadd.f32 %v746, %v880
    %v913 = vadd.f32 %v747, %v881
    %v914 = vadd.f32 %v748, %v882
    %vm915 = vcmask 1043456
    %v916 = vrot.slane %v190, 4
    %v917 = vrot.slane %v195, 4
    %v918 = vsel %vm915, %v916, %v917
    %v919 = vrot.slane %v200, 4
    %v920 = vsel %vm915, %v917, %v919
    %v921 = vrot.slane %v205, 4
    %v922 = vsel %vm915, %v919, %v921
    %v923 = vrot.slane %v210, 4
    %v924 = vsel %vm915, %v921, %v923
    %v925 = vrot.slane %v215, 4
    %v926 = vsel %vm915, %v923, %v925
    %v927 = vrot.slane %v220, 4
    %v928 = vsel %vm915, %v925, %v927
    %v929 = vrot.slane %v225, 4
    %v930 = vsel %vm915, %v927, %v929
    %v931 = vrot.slane %v230, 4
    %v932 = vsel %vm915, %v929, %v931
    %v933 = vrot.slane %v235, 4
    %v934 = vsel %vm915, %v931, %v933
    %v935 = vrot.slane %v240, 4
    %v936 = vsel %vm915, %v933, %v935
    %v937 = vrot.slane %v245, 4
    %v938 = vsel %vm915, %v935, %v937
    %v939 = vrot.slane %v250, 4
    %v940 = vsel %vm915, %v937, %v939
    %v941 = vrot.slane %v255, 4
    %v942 = vsel %vm915, %v939, %v941
    %v943 = vrot.slane %v260, 4
    %v944 = vsel %vm915, %v941, %v943
    %v945 = vrot.slane %v265, 4
    %v946 = vsel %vm915, %v943, %v945
    %v947 = vrot.slane %v270, 4
    %v948 = vsel %vm915, %v945, %v947
    %v949 = vrot.slane %v275, 4
    %v950 = vsel %vm915, %v947, %v949
    %v951 = vrot.slane %v280, 4
    %v952 = vsel %vm915, %v949, %v951
    %v953 = vrot.slane %v285, 4
    %v954 = vsel %vm915, %v951, %v953
    %v955 = vrot.slane %v290, 4
    %v956 = vsel %vm915, %v953, %v955
    %v957 = vrot.slane %v295, 4
    %v958 = vsel %vm915, %v955, %v957
    %v959 = vrot.slane %v300, 4
    %v960 = vsel %vm915, %v957, %v959
    %v961 = vrot.slane %v305, 4
    %v962 = vsel %vm915, %v959, %v961
    %v963 = vrot.slane %v310, 4
    %v964 = vsel %vm915, %v961, %v963
    %v965 = vrot.slane %v315, 4
    %v966 = vsel %vm915, %v963, %v965
    %v967 = vrot.slane %v320, 4
    %v968 = vsel %vm915, %v965, %v967
    %v969 = vrot.slane %v325, 4
    %v970 = vsel %vm915, %v967, %v969
    %v971 = vrot.slane %v330, 4
    %v972 = vsel %vm915, %v969, %v971
    %v973 = vrot.slane %v335, 4
    %v974 = vsel %vm915, %v971, %v973
    %v975 = vrot.slane %v340, 4
    %v976 = vsel %vm915, %v973, %v975
    %v977 = vrot.slane %v345, 4
    %v978 = vsel %vm915, %v975, %v977
    %v1011 = vsel %vm915, %v977, 0.0
    %v1012 = vld [vmem:[%s3 + $0x4] sm:$0x1]
    %v1013 = vlaneseq
    %v1014 = vshrl.u32 %v1013, 7
    %v1015 = vsub.s32 0, %v1014
    %v1016 = vrot.slane %v1012, %v1015
    %v1017 = vmul.f32 %v918, %v1016
    %v1018 = vmul.f32 %v920, %v1016
    %v1019 = vmul.f32 %v922, %v1016
    %v1020 = vmul.f32 %v924, %v1016
    %v1021 = vmul.f32 %v926, %v1016
    %v1022 = vmul.f32 %v928, %v1016
    %v1023 = vmul.f32 %v930, %v1016
    %v1024 = vmul.f32 %v932, %v1016
    %v1025 = vmul.f32 %v934, %v1016
    %v1026 = vmul.f32 %v936, %v1016
    %v1027 = vmul.f32 %v938, %v1016
    %v1028 = vmul.f32 %v940, %v1016
    %v1029 = vmul.f32 %v942, %v1016
    %v1030 = vmul.f32 %v944, %v1016
    %v1031 = vmul.f32 %v946, %v1016
    %v1032 = vmul.f32 %v948, %v1016
    %v1033 = vmul.f32 %v950, %v1016
    %v1034 = vmul.f32 %v952, %v1016
    %v1035 = vmul.f32 %v954, %v1016
    %v1036 = vmul.f32 %v956, %v1016
    %v1037 = vmul.f32 %v958, %v1016
    %v1038 = vmul.f32 %v960, %v1016
    %v1039 = vmul.f32 %v962, %v1016
    %v1040 = vmul.f32 %v964, %v1016
    %v1041 = vmul.f32 %v966, %v1016
    %v1042 = vmul.f32 %v968, %v1016
    %v1043 = vmul.f32 %v970, %v1016
    %v1044 = vmul.f32 %v972, %v1016
    %v1045 = vmul.f32 %v974, %v1016
    %v1046 = vmul.f32 %v976, %v1016
    %v1047 = vmul.f32 %v978, %v1016
    %v1048 = vmul.f32 %v1011, %v1016
    %v1049 = vadd.f32 %v883, %v1017
    %v1050 = vadd.f32 %v884, %v1018
    %v1051 = vadd.f32 %v885, %v1019
    %v1052 = vadd.f32 %v886, %v1020
    %v1053 = vadd.f32 %v887, %v1021
    %v1054 = vadd.f32 %v888, %v1022
    %v1055 = vadd.f32 %v889, %v1023
    %v1056 = vadd.f32 %v890, %v1024
    %v1057 = vadd.f32 %v891, %v1025
    %v1058 = vadd.f32 %v892, %v1026
    %v1059 = vadd.f32 %v893, %v1027
    %v1060 = vadd.f32 %v894, %v1028
    %v1061 = vadd.f32 %v895, %v1029
    %v1062 = vadd.f32 %v896, %v1030
    %v1063 = vadd.f32 %v897, %v1031
    %v1064 = vadd.f32 %v898, %v1032
    %v1065 = vadd.f32 %v899, %v1033
    %v1066 = vadd.f32 %v900, %v1034
    %v1067 = vadd.f32 %v901, %v1035
    %v1068 = vadd.f32 %v902, %v1036
    %v1069 = vadd.f32 %v903, %v1037
    %v1070 = vadd.f32 %v904, %v1038
    %v1071 = vadd.f32 %v905, %v1039
    %v1072 = vadd.f32 %v906, %v1040
    %v1073 = vadd.f32 %v907, %v1041
    %v1074 = vadd.f32 %v908, %v1042
    %v1075 = vadd.f32 %v909, %v1043
    %v1076 = vadd.f32 %v910, %v1044
    %v1077 = vadd.f32 %v911, %v1045
    %v1078 = vadd.f32 %v912, %v1046
    %v1079 = vadd.f32 %v913, %v1047
    %v1080 = vadd.f32 %v914, %v1048
    %v1081 = vld [vmem:[#allocation8] sm:$0xff]
    %v1082 = vld [vmem:[#allocation8 + $0x8] sm:$0xff]
    %v1083 = vld [vmem:[#allocation8 + $0x10] sm:$0xff]
    %v1084 = vld [vmem:[#allocation8 + $0x18] sm:$0xff]
    %v1085 = vld [vmem:[#allocation8 + $0x20] sm:$0xff]
    %v1086 = vld [vmem:[#allocation8 + $0x28] sm:$0xff]
    %v1087 = vld [vmem:[#allocation8 + $0x30] sm:$0xff]
    %v1088 = vld [vmem:[#allocation8 + $0x38] sm:$0xff]
    %v1089 = vld [vmem:[#allocation8 + $0x40] sm:$0xff]
    %v1090 = vld [vmem:[#allocation8 + $0x48] sm:$0xff]
    %v1091 = vld [vmem:[#allocation8 + $0x50] sm:$0xff]
    %v1092 = vld [vmem:[#allocation8 + $0x58] sm:$0xff]
    %v1093 = vld [vmem:[#allocation8 + $0x60] sm:$0xff]
    %v1094 = vld [vmem:[#allocation8 + $0x68] sm:$0xff]
    %v1095 = vld [vmem:[#allocation8 + $0x70] sm:$0xff]
    %v1096 = vld [vmem:[#allocation8 + $0x78] sm:$0xff]
    %1097 = vmatprep.subr.mxu0 0.0
    %1098 = vmatpush1.msra.mxu0 %v1081
    %1099 = vmatprep.subr.mxu0 0.0
    %1100 = vmatpush1.msra.mxu0 %v1082
    %1101 = vmatprep.subr.mxu0 0.0
    %1102 = vmatpush1.msra.mxu0 %v1083
    %1103 = vmatprep.subr.mxu0 0.0
    %1104 = vmatpush1.msra.mxu0 %v1084
    %1105 = vmatprep.subr.mxu0 0.0
    %1106 = vmatpush1.msra.mxu0 %v1085
    %1107 = vmatprep.subr.mxu0 0.0
    %1108 = vmatpush1.msra.mxu0 %v1086
    %1109 = vmatprep.subr.mxu0 0.0
    %1110 = vmatpush1.msra.mxu0 %v1087
    %1111 = vmatprep.subr.mxu0 0.0
    %1112 = vmatpush1.msra.mxu0 %v1088
    %1113 = vmatprep.subr.mxu0 0.0
    %1114 = vmatpush1.msra.mxu0 %v1089
    %1115 = vmatprep.subr.mxu0 0.0
    %1116 = vmatpush1.msra.mxu0 %v1090
    %1117 = vmatprep.subr.mxu0 0.0
    %1118 = vmatpush1.msra.mxu0 %v1091
    %1119 = vmatprep.subr.mxu0 0.0
    %1120 = vmatpush1.msra.mxu0 %v1092
    %1121 = vmatprep.subr.mxu0 0.0
    %1122 = vmatpush1.msra.mxu0 %v1093
    %1123 = vmatprep.subr.mxu0 0.0
    %1124 = vmatpush1.msra.mxu0 %v1094
    %1125 = vmatprep.subr.mxu0 0.0
    %1126 = vmatpush1.msra.mxu0 %v1095
    %1127 = vmatprep.subr.mxu0 0.0
    %1128 = vmatpush1.msra.mxu0 %v1096
    %1129 = vmatprep.subr.mxu0 0.0
    %1130 = vmatpush1.msra.mxu0 0.0
    %1131 = vmatprep.subr.mxu0 0.0
    %1132 = vmatpush1.msra.mxu0 0.0
    %1133 = vmatprep.subr.mxu0 0.0
    %1134 = vmatpush1.msra.mxu0 0.0
    %1135 = vmatprep.subr.mxu0 0.0
    %1136 = vmatpush1.msra.mxu0 0.0
    %1137 = vmatprep.subr.mxu0 0.0
    %1138 = vmatpush1.msra.mxu0 0.0
    %1139 = vmatprep.subr.mxu0 0.0
    %1140 = vmatpush1.msra.mxu0 0.0
    %1141 = vmatprep.subr.mxu0 0.0
    %1142 = vmatpush1.msra.mxu0 0.0
    %1143 = vmatprep.subr.mxu0 0.0
    %1144 = vmatpush1.msra.mxu0 0.0
    %1145 = vmatprep.subr.mxu0 0.0
    %1146 = vmatpush1.msra.mxu0 0.0
    %1147 = vmatprep.subr.mxu0 0.0
    %1148 = vmatpush1.msra.mxu0 0.0
    %1149 = vmatprep.subr.mxu0 0.0
    %1150 = vmatpush1.msra.mxu0 0.0
    %1151 = vmatprep.subr.mxu0 0.0
    %1152 = vmatpush1.msra.mxu0 0.0
    %1153 = vmatprep.subr.mxu0 0.0
    %1154 = vmatpush1.msra.mxu0 0.0
    %1155 = vmatprep.subr.mxu0 0.0
    %1156 = vmatpush1.msra.mxu0 0.0
    %1157 = vmatprep.subr.mxu0 0.0
    %1158 = vmatpush1.msra.mxu0 0.0
    %1159 = vmatprep.subr.mxu0 0.0
    %1160 = vmatpush1.msra.mxu0 0.0
    %1161 = vmatprep.mubr.f32.mxu0 0.0
    %1162 = vmatmul.mubr.f32.gmra.mrb[0].mxu0 %v1049
    %v1163 = vpop.f32.mrb[0].mxu0
    %v1164 = vadd.f32 0.0, %v1163
    %v1165 = vpop.f32.mrb[0].mxu0
    %1166 = vmatprep.mubr.f32.mxu0 0.0
    %1167 = vmatmul.mubr.f32.gmra.mrb[0].mxu0 %v1050
    %v1168 = vpop.f32.mrb[0].mxu0
    %v1169 = vadd.f32 0.0, %v1168
    %v1170 = vpop.f32.mrb[0].mxu0
    %1171 = vmatprep.mubr.f32.mxu0 0.0
    %1172 = vmatmul.mubr.f32.gmra.mrb[0].mxu0 %v1051
    %v1173 = vpop.f32.mrb[0].mxu0
    %v1174 = vadd.f32 0.0, %v1173
    %v1175 = vpop.f32.mrb[0].mxu0
    %1176 = vmatprep.mubr.f32.mxu0 0.0
    %1177 = vmatmul.mubr.f32.gmra.mrb[0].mxu0 %v1052
    %v1178 = vpop.f32.mrb[0].mxu0
    %v1179 = vadd.f32 0.0, %v1178
    %v1180 = vpop.f32.mrb[0].mxu0
    %1181 = vmatprep.mubr.f32.mxu0 0.0
    %1182 = vmatmul.mubr.f32.gmra.mrb[0].mxu0 %v1053
    %v1183 = vpop.f32.mrb[0].mxu0
    %v1184 = vadd.f32 0.0, %v1183
    %v1185 = vpop.f32.mrb[0].mxu0
    %1186 = vmatprep.mubr.f32.mxu0 0.0
    %1187 = vmatmul.mubr.f32.gmra.mrb[0].mxu0 %v1054
    %v1188 = vpop.f32.mrb[0].mxu0
    %v1189 = vadd.f32 0.0, %v1188
    %v1190 = vpop.f32.mrb[0].mxu0
    %1191 = vmatprep.mubr.f32.mxu0 0.0
    %1192 = vmatmul.mubr.f32.gmra.mrb[0].mxu0 %v1055
    %v1193 = vpop.f32.mrb[0].mxu0
    %v1194 = vadd.f32 0.0, %v1193
    %v1195 = vpop.f32.mrb[0].mxu0
    %1196 = vmatprep.mubr.f32.mxu0 0.0
    %1197 = vmatmul.mubr.f32.gmra.mrb[0].mxu0 %v1056
    %v1198 = vpop.f32.mrb[0].mxu0
    %v1199 = vadd.f32 0.0, %v1198
    %v1200 = vpop.f32.mrb[0].mxu0
    %1201 = vmatprep.mubr.f32.mxu0 0.0
    %1202 = vmatmul.mubr.f32.gmra.mrb[0].mxu0 %v1057
    %v1203 = vpop.f32.mrb[0].mxu0
    %v1204 = vadd.f32 0.0, %v1203
    %v1205 = vpop.f32.mrb[0].mxu0
    %1206 = vmatprep.mubr.f32.mxu0 0.0
    %1207 = vmatmul.mubr.f32.gmra.mrb[0].mxu0 %v1058
    %v1208 = vpop.f32.mrb[0].mxu0
    %v1209 = vadd.f32 0.0, %v1208
    %v1210 = vpop.f32.mrb[0].mxu0
    %1211 = vmatprep.mubr.f32.mxu0 0.0
    %1212 = vmatmul.mubr.f32.gmra.mrb[0].mxu0 %v1059
    %v1213 = vpop.f32.mrb[0].mxu0
    %v1214 = vadd.f32 0.0, %v1213
    %v1215 = vpop.f32.mrb[0].mxu0
    %1216 = vmatprep.mubr.f32.mxu0 0.0
    %1217 = vmatmul.mubr.f32.gmra.mrb[0].mxu0 %v1060
    %v1218 = vpop.f32.mrb[0].mxu0
    %v1219 = vadd.f32 0.0, %v1218
    %v1220 = vpop.f32.mrb[0].mxu0
    %1221 = vmatprep.mubr.f32.mxu0 0.0
    %1222 = vmatmul.mubr.f32.gmra.mrb[0].mxu0 %v1061
    %v1223 = vpop.f32.mrb[0].mxu0
    %v1224 = vadd.f32 0.0, %v1223
    %v1225 = vpop.f32.mrb[0].mxu0
    %1226 = vmatprep.mubr.f32.mxu0 0.0
    %1227 = vmatmul.mubr.f32.gmra.mrb[0].mxu0 %v1062
    %v1228 = vpop.f32.mrb[0].mxu0
    %v1229 = vadd.f32 0.0, %v1228
    %v1230 = vpop.f32.mrb[0].mxu0
    %1231 = vmatprep.mubr.f32.mxu0 0.0
    %1232 = vmatmul.mubr.f32.gmra.mrb[0].mxu0 %v1063
    %v1233 = vpop.f32.mrb[0].mxu0
    %v1234 = vadd.f32 0.0, %v1233
    %v1235 = vpop.f32.mrb[0].mxu0
    %1236 = vmatprep.mubr.f32.mxu0 0.0
    %1237 = vmatmul.mubr.f32.gmra.mrb[0].mxu0 %v1064
    %v1238 = vpop.f32.mrb[0].mxu0
    %v1239 = vadd.f32 0.0, %v1238
    %v1240 = vpop.f32.mrb[0].mxu0
    %1241 = vmatprep.mubr.f32.mxu0 0.0
    %1242 = vmatmul.mubr.f32.gmra.mrb[0].mxu0 %v1065
    %v1243 = vpop.f32.mrb[0].mxu0
    %v1244 = vadd.f32 0.0, %v1243
    %v1245 = vpop.f32.mrb[0].mxu0
    %1246 = vmatprep.mubr.f32.mxu0 0.0
    %1247 = vmatmul.mubr.f32.gmra.mrb[0].mxu0 %v1066
    %v1248 = vpop.f32.mrb[0].mxu0
    %v1249 = vadd.f32 0.0, %v1248
    %v1250 = vpop.f32.mrb[0].mxu0
    %1251 = vmatprep.mubr.f32.mxu0 0.0
    %1252 = vmatmul.mubr.f32.gmra.mrb[0].mxu0 %v1067
    %v1253 = vpop.f32.mrb[0].mxu0
    %v1254 = vadd.f32 0.0, %v1253
    %v1255 = vpop.f32.mrb[0].mxu0
    %1256 = vmatprep.mubr.f32.mxu0 0.0
    %1257 = vmatmul.mubr.f32.gmra.mrb[0].mxu0 %v1068
    %v1258 = vpop.f32.mrb[0].mxu0
    %v1259 = vadd.f32 0.0, %v1258
    %v1260 = vpop.f32.mrb[0].mxu0
    %1261 = vmatprep.mubr.f32.mxu0 0.0
    %1262 = vmatmul.mubr.f32.gmra.mrb[0].mxu0 %v1069
    %v1263 = vpop.f32.mrb[0].mxu0
    %v1264 = vadd.f32 0.0, %v1263
    %v1265 = vpop.f32.mrb[0].mxu0
    %1266 = vmatprep.mubr.f32.mxu0 0.0
    %1267 = vmatmul.mubr.f32.gmra.mrb[0].mxu0 %v1070
    %v1268 = vpop.f32.mrb[0].mxu0
    %v1269 = vadd.f32 0.0, %v1268
    %v1270 = vpop.f32.mrb[0].mxu0
    %1271 = vmatprep.mubr.f32.mxu0 0.0
    %1272 = vmatmul.mubr.f32.gmra.mrb[0].mxu0 %v1071
    %v1273 = vpop.f32.mrb[0].mxu0
    %v1274 = vadd.f32 0.0, %v1273
    %v1275 = vpop.f32.mrb[0].mxu0
    %1276 = vmatprep.mubr.f32.mxu0 0.0
    %1277 = vmatmul.mubr.f32.gmra.mrb[0].mxu0 %v1072
    %v1278 = vpop.f32.mrb[0].mxu0
    %v1279 = vadd.f32 0.0, %v1278
    %v1280 = vpop.f32.mrb[0].mxu0
    %1281 = vmatprep.mubr.f32.mxu0 0.0
    %1282 = vmatmul.mubr.f32.gmra.mrb[0].mxu0 %v1073
    %v1283 = vpop.f32.mrb[0].mxu0
    %v1284 = vadd.f32 0.0, %v1283
    %v1285 = vpop.f32.mrb[0].mxu0
    %1286 = vmatprep.mubr.f32.mxu0 0.0
    %1287 = vmatmul.mubr.f32.gmra.mrb[0].mxu0 %v1074
    %v1288 = vpop.f32.mrb[0].mxu0
    %v1289 = vadd.f32 0.0, %v1288
    %v1290 = vpop.f32.mrb[0].mxu0
    %1291 = vmatprep.mubr.f32.mxu0 0.0
    %1292 = vmatmul.mubr.f32.gmra.mrb[0].mxu0 %v1075
    %v1293 = vpop.f32.mrb[0].mxu0
    %v1294 = vadd.f32 0.0, %v1293
    %v1295 = vpop.f32.mrb[0].mxu0
    %1296 = vmatprep.mubr.f32.mxu0 0.0
    %1297 = vmatmul.mubr.f32.gmra.mrb[0].mxu0 %v1076
    %v1298 = vpop.f32.mrb[0].mxu0
    %v1299 = vadd.f32 0.0, %v1298
    %v1300 = vpop.f32.mrb[0].mxu0
    %1301 = vmatprep.mubr.f32.mxu0 0.0
    %1302 = vmatmul.mubr.f32.gmra.mrb[0].mxu0 %v1077
    %v1303 = vpop.f32.mrb[0].mxu0
    %v1304 = vadd.f32 0.0, %v1303
    %v1305 = vpop.f32.mrb[0].mxu0
    %1306 = vmatprep.mubr.f32.mxu0 0.0
    %1307 = vmatmul.mubr.f32.gmra.mrb[0].mxu0 %v1078
    %v1308 = vpop.f32.mrb[0].mxu0
    %v1309 = vadd.f32 0.0, %v1308
    %v1310 = vpop.f32.mrb[0].mxu0
    %1311 = vmatprep.mubr.f32.mxu0 0.0
    %1312 = vmatmul.mubr.f32.gmra.mrb[0].mxu0 %v1079
    %v1313 = vpop.f32.mrb[0].mxu0
    %v1314 = vadd.f32 0.0, %v1313
    %v1315 = vpop.f32.mrb[0].mxu0
    %1316 = vmatprep.mubr.f32.mxu0 0.0
    %1317 = vmatmul.mubr.f32.gmra.mrb[0].mxu0 %v1080
    %v1318 = vpop.f32.mrb[0].mxu0
    %v1319 = vadd.f32 0.0, %v1318
    %v1320 = vpop.f32.mrb[0].mxu0
    %1321 = vdwg.mxu0
    %v1322 = vlaneseq
    %v1323 = vshrl.u32 %v1322, 7
    %v1324 = vadd.s32 %v1323, 8
    %v1325 = vadd.s32 %v1323, 16
    %v1326 = vadd.s32 %v1323, 24
    %vm1327 = vcmp.ge.s32.totalorder %v1323, 16
    %vm1328 = vcmp.ge.s32.totalorder %v1324, 16
    %vm1329 = vcmp.ge.s32.totalorder %v1325, 16
    %vm1330 = vcmp.ge.s32.totalorder %v1326, 16
    %v1331 = vsub.s32 %v1323, 16
    %v1332 = vsub.s32 %v1324, 16
    %v1333 = vsub.s32 %v1326, 16
    %v1334 = vsel %vm1327, %v1331, %v1323
    %v1335 = vsel %vm1328, %v1332, %v1324
    %v1336 = vsel %vm1329, %v1323, %v1325
    %v1337 = vsel %vm1330, %v1333, %v1326
    %v1338 = vlaneseq
    %v1339 = vand.u32 %v1338, 127
    %v1340 = vsub.s32 8, %v1339
    %vm1341 = vcmp.lt.s32.totalorder %v1334, %v1340
    %vm1342 = vcmp.lt.s32.totalorder %v1335, %v1340
    %vm1343 = vcmp.lt.s32.totalorder %v1336, %v1340
    %vm1344 = vcmp.lt.s32.totalorder %v1337, %v1340
    %v1345 = vsel %vm1341, %v1164, -1e+30
    %v1346 = vsel %vm1342, %v1169, -1e+30
    %v1347 = vsel %vm1343, %v1174, -1e+30
    %v1348 = vsel %vm1344, %v1179, -1e+30
    %v1349 = vsel %vm1341, %v1184, -1e+30
    %v1350 = vsel %vm1342, %v1189, -1e+30
    %v1351 = vsel %vm1343, %v1194, -1e+30
    %v1352 = vsel %vm1344, %v1199, -1e+30
    %v1353 = vsel %vm1341, %v1204, -1e+30
    %v1354 = vsel %vm1342, %v1209, -1e+30
    %v1355 = vsel %vm1343, %v1214, -1e+30
    %v1356 = vsel %vm1344, %v1219, -1e+30
    %v1357 = vsel %vm1341, %v1224, -1e+30
    %v1358 = vsel %vm1342, %v1229, -1e+30
    %v1359 = vsel %vm1343, %v1234, -1e+30
    %v1360 = vsel %vm1344, %v1239, -1e+30
    %v1361 = vsel %vm1341, %v1244, -1e+30
    %v1362 = vsel %vm1342, %v1249, -1e+30
    %v1363 = vsel %vm1343, %v1254, -1e+30
    %v1364 = vsel %vm1344, %v1259, -1e+30
    %v1365 = vsel %vm1341, %v1264, -1e+30
    %v1366 = vsel %vm1342, %v1269, -1e+30
    %v1367 = vsel %vm1343, %v1274, -1e+30
    %v1368 = vsel %vm1344, %v1279, -1e+30
    %v1369 = vsel %vm1341, %v1284, -1e+30
    %v1370 = vsel %vm1342, %v1289, -1e+30
    %v1371 = vsel %vm1343, %v1294, -1e+30
    %v1372 = vsel %vm1344, %v1299, -1e+30
    %v1373 = vsel %vm1341, %v1304, -1e+30
    %v1374 = vsel %vm1342, %v1309, -1e+30
    %v1375 = vsel %vm1343, %v1314, -1e+30
    %v1376 = vsel %vm1344, %v1319, -1e+30
    %v1377 = vmax.f32 %v1345, %v1346
    %v1378 = vmax.f32 %v1377, %v1347
    %v1379 = vmax.f32 %v1378, %v1348
    %v1380 = vrot.slane %v1379, 4
    %v1381 = vmax.f32 %v1379, %v1380
    %v1382 = vrot.slane %v1381, 2
    %v1383 = vmax.f32 %v1381, %v1382
    %v1384 = vrot.slane %v1383, 1
    %v1385 = vmax.f32 %v1383, %v1384
    %v1386 = vmax.f32 %v1349, %v1350
    %v1387 = vmax.f32 %v1386, %v1351
    %v1388 = vmax.f32 %v1387, %v1352
    %v1389 = vrot.slane %v1388, 4
    %v1390 = vmax.f32 %v1388, %v1389
    %v1391 = vrot.slane %v1390, 2
    %v1392 = vmax.f32 %v1390, %v1391
    %v1393 = vrot.slane %v1392, 1
    %v1394 = vmax.f32 %v1392, %v1393
    %v1395 = vmax.f32 %v1353, %v1354
    %v1396 = vmax.f32 %v1395, %v1355
    %v1397 = vmax.f32 %v1396, %v1356
    %v1398 = vrot.slane %v1397, 4
    %v1399 = vmax.f32 %v1397, %v1398
    %v1400 = vrot.slane %v1399, 2
    %v1401 = vmax.f32 %v1399, %v1400
    %v1402 = vrot.slane %v1401, 1
    %v1403 = vmax.f32 %v1401, %v1402
    %v1404 = vmax.f32 %v1357, %v1358
    %v1405 = vmax.f32 %v1404, %v1359
    %v1406 = vmax.f32 %v1405, %v1360
    %v1407 = vrot.slane %v1406, 4
    %v1408 = vmax.f32 %v1406, %v1407
    %v1409 = vrot.slane %v1408, 2
    %v1410 = vmax.f32 %v1408, %v1409
    %v1411 = vrot.slane %v1410, 1
    %v1412 = vmax.f32 %v1410, %v1411
    %v1413 = vmax.f32 %v1361, %v1362
    %v1414 = vmax.f32 %v1413, %v1363
    %v1415 = vmax.f32 %v1414, %v1364
    %v1416 = vrot.slane %v1415, 4
    %v1417 = vmax.f32 %v1415, %v1416
    %v1418 = vrot.slane %v1417, 2
    %v1419 = vmax.f32 %v1417, %v1418
    %v1420 = vrot.slane %v1419, 1
    %v1421 = vmax.f32 %v1419, %v1420
    %v1422 = vmax.f32 %v1365, %v1366
    %v1423 = vmax.f32 %v1422, %v1367
    %v1424 = vmax.f32 %v1423, %v1368
    %v1425 = vrot.slane %v1424, 4
    %v1426 = vmax.f32 %v1424, %v1425
    %v1427 = vrot.slane %v1426, 2
    %v1428 = vmax.f32 %v1426, %v1427
    %v1429 = vrot.slane %v1428, 1
    %v1430 = vmax.f32 %v1428, %v1429
    %v1431 = vmax.f32 %v1369, %v1370
    %v1432 = vmax.f32 %v1431, %v1371
    %v1433 = vmax.f32 %v1432, %v1372
    %v1434 = vrot.slane %v1433, 4
    %v1435 = vmax.f32 %v1433, %v1434
    %v1436 = vrot.slane %v1435, 2
    %v1437 = vmax.f32 %v1435, %v1436
    %v1438 = vrot.slane %v1437, 1
    %v1439 = vmax.f32 %v1437, %v1438
    %v1440 = vmax.f32 %v1373, %v1374
    %v1441 = vmax.f32 %v1440, %v1375
    %v1442 = vmax.f32 %v1441, %v1376
    %v1443 = vrot.slane %v1442, 4
    %v1444 = vmax.f32 %v1442, %v1443
    %v1445 = vrot.slane %v1444, 2
    %v1446 = vmax.f32 %v1444, %v1445
    %v1447 = vrot.slane %v1446, 1
    %v1448 = vmax.f32 %v1446, %v1447
    %s1449 = sld [smem:[#allocation9]]
    %v1450 = vstv %s1449
    %v1451 = vadd.f32 %v1385, %v1450
    %v1452 = vadd.f32 %v1394, %v1450
    %v1453 = vadd.f32 %v1403, %v1450
    %v1454 = vadd.f32 %v1412, %v1450
    %v1455 = vadd.f32 %v1421, %v1450
    %v1456 = vadd.f32 %v1430, %v1450
    %v1457 = vadd.f32 %v1439, %v1450
    %v1458 = vadd.f32 %v1448, %v1450
    %s1459 = sld [smem:[#allocation9 + $0x1]]
    %v1460 = vstv %s1459
    %v1461 = vadd.f32 %v1385, %v1460
    %v1462 = vadd.f32 %v1394, %v1460
    %v1463 = vadd.f32 %v1403, %v1460
    %v1464 = vadd.f32 %v1412, %v1460
    %v1465 = vadd.f32 %v1421, %v1460
    %v1466 = vadd.f32 %v1430, %v1460
    %v1467 = vadd.f32 %v1439, %v1460
    %v1468 = vadd.f32 %v1448, %v1460
    %s1469 = sld [smem:[#allocation9 + $0x2]]
    %v1470 = vstv %s1469
    %v1471 = vadd.f32 %v1385, %v1470
    %v1472 = vadd.f32 %v1394, %v1470
    %v1473 = vadd.f32 %v1403, %v1470
    %v1474 = vadd.f32 %v1412, %v1470
    %v1475 = vadd.f32 %v1421, %v1470
    %v1476 = vadd.f32 %v1430, %v1470
    %v1477 = vadd.f32 %v1439, %v1470
    %v1478 = vadd.f32 %v1448, %v1470
    %s1479 = sld [smem:[#allocation9 + $0x3]]
    %v1480 = vstv %s1479
    %v1481 = vmul.f32 %v1451, %v1480
    %v1482 = vmul.f32 %v1452, %v1480
    %v1483 = vmul.f32 %v1453, %v1480
    %v1484 = vmul.f32 %v1454, %v1480
    %v1485 = vmul.f32 %v1455, %v1480
    %v1486 = vmul.f32 %v1456, %v1480
    %v1487 = vmul.f32 %v1457, %v1480
    %v1488 = vmul.f32 %v1458, %v1480
    %s1489 = sld [smem:[#allocation9 + $0x4]]
    %v1490 = vstv %s1489
    %v1491 = vmul.f32 %v1461, %v1490
    %v1492 = vmul.f32 %v1462, %v1490
    %v1493 = vmul.f32 %v1463, %v1490
    %v1494 = vmul.f32 %v1464, %v1490
    %v1495 = vmul.f32 %v1465, %v1490
    %v1496 = vmul.f32 %v1466, %v1490
    %v1497 = vmul.f32 %v1467, %v1490
    %v1498 = vmul.f32 %v1468, %v1490
    %1507 = vrot.lane.b32.xlu0 %v1491, 127
    %v1508 = vpop.permute.xlu0 %1507
    %1509 = vrot.lane.b32.xlu0 %v1492, 127
    %v1510 = vpop.permute.xlu0 %1509
    %1511 = vrot.lane.b32.xlu0 %v1493, 127
    %v1512 = vpop.permute.xlu0 %1511
    %1513 = vrot.lane.b32.xlu0 %v1494, 127
    %v1514 = vpop.permute.xlu0 %1513
    %1515 = vrot.lane.b32.xlu0 %v1495, 127
    %v1516 = vpop.permute.xlu0 %1515
    %1517 = vrot.lane.b32.xlu0 %v1496, 127
    %v1518 = vpop.permute.xlu0 %1517
    %1519 = vrot.lane.b32.xlu0 %v1497, 127
    %v1520 = vpop.permute.xlu0 %1519
    %1521 = vrot.lane.b32.xlu0 %v1498, 127
    %v1522 = vpop.permute.xlu0 %1521
    %v1531 = vadd.f32 %v1481, %v1508
    %v1532 = vadd.f32 %v1482, %v1510
    %v1533 = vadd.f32 %v1483, %v1512
    %v1534 = vadd.f32 %v1484, %v1514
    %v1535 = vadd.f32 %v1485, %v1516
    %v1536 = vadd.f32 %v1486, %v1518
    %v1537 = vadd.f32 %v1487, %v1520
    %v1538 = vadd.f32 %v1488, %v1522
    %s1539 = sld [smem:[#allocation9 + $0x5]]
    %v1540 = vstv %s1539
    %v1541 = vmul.f32 %v1471, %v1540
    %v1542 = vmul.f32 %v1472, %v1540
    %v1543 = vmul.f32 %v1473, %v1540
    %v1544 = vmul.f32 %v1474, %v1540
    %v1545 = vmul.f32 %v1475, %v1540
    %v1546 = vmul.f32 %v1476, %v1540
    %v1547 = vmul.f32 %v1477, %v1540
    %v1548 = vmul.f32 %v1478, %v1540
    %1557 = vrot.lane.b32.xlu0 %v1541, 126
    %v1558 = vpop.permute.xlu0 %1557
    %1559 = vrot.lane.b32.xlu0 %v1542, 126
    %v1560 = vpop.permute.xlu0 %1559
    %1561 = vrot.lane.b32.xlu0 %v1543, 126
    %v1562 = vpop.permute.xlu0 %1561
    %1563 = vrot.lane.b32.xlu0 %v1544, 126
    %v1564 = vpop.permute.xlu0 %1563
    %1565 = vrot.lane.b32.xlu0 %v1545, 126
    %v1566 = vpop.permute.xlu0 %1565
    %1567 = vrot.lane.b32.xlu0 %v1546, 126
    %v1568 = vpop.permute.xlu0 %1567
    %1569 = vrot.lane.b32.xlu0 %v1547, 126
    %v1570 = vpop.permute.xlu0 %1569
    %1571 = vrot.lane.b32.xlu0 %v1548, 126
    %v1572 = vpop.permute.xlu0 %1571
    %v1581 = vadd.f32 %v1531, %v1558
    %v1582 = vadd.f32 %v1532, %v1560
    %v1583 = vadd.f32 %v1533, %v1562
    %v1584 = vadd.f32 %v1534, %v1564
    %v1585 = vadd.f32 %v1535, %v1566
    %v1586 = vadd.f32 %v1536, %v1568
    %v1587 = vadd.f32 %v1537, %v1570
    %v1588 = vadd.f32 %v1538, %v1572
    %s1589 = sld [smem:[#allocation9 + $0x9]]
    %v1590 = vstv %s1589
    %v1591 = vadd.f32 %v1581, %v1590
    %v1592 = vadd.f32 %v1582, %v1590
    %v1593 = vadd.f32 %v1583, %v1590
    %v1594 = vadd.f32 %v1584, %v1590
    %v1595 = vadd.f32 %v1585, %v1590
    %v1596 = vadd.f32 %v1586, %v1590
    %v1597 = vadd.f32 %v1587, %v1590
    %v1598 = vadd.f32 %v1588, %v1590
    %s1599 = sld [smem:[#allocation9 + $0x6]]
    %v1600 = vstv %s1599
    %v1601 = vmul.f32 %v1451, %v1600
    %v1602 = vmul.f32 %v1452, %v1600
    %v1603 = vmul.f32 %v1453, %v1600
    %v1604 = vmul.f32 %v1454, %v1600
    %v1605 = vmul.f32 %v1455, %v1600
    %v1606 = vmul.f32 %v1456, %v1600
    %v1607 = vmul.f32 %v1457, %v1600
    %v1608 = vmul.f32 %v1458, %v1600
    %s1609 = sld [smem:[#allocation9 + $0x7]]
    %v1610 = vstv %s1609
    %v1611 = vmul.f32 %v1461, %v1610
    %v1612 = vmul.f32 %v1462, %v1610
    %v1613 = vmul.f32 %v1463, %v1610
    %v1614 = vmul.f32 %v1464, %v1610
    %v1615 = vmul.f32 %v1465, %v1610
    %v1616 = vmul.f32 %v1466, %v1610
    %v1617 = vmul.f32 %v1467, %v1610
    %v1618 = vmul.f32 %v1468, %v1610
    %1627 = vrot.lane.b32.xlu0 %v1611, 127
    %v1628 = vpop.permute.xlu0 %1627
    %1629 = vrot.lane.b32.xlu0 %v1612, 127
    %v1630 = vpop.permute.xlu0 %1629
    %1631 = vrot.lane.b32.xlu0 %v1613, 127
    %v1632 = vpop.permute.xlu0 %1631
    %1633 = vrot.lane.b32.xlu0 %v1614, 127
    %v1634 = vpop.permute.xlu0 %1633
    %1635 = vrot.lane.b32.xlu0 %v1615, 127
    %v1636 = vpop.permute.xlu0 %1635
    %1637 = vrot.lane.b32.xlu0 %v1616, 127
    %v1638 = vpop.permute.xlu0 %1637
    %1639 = vrot.lane.b32.xlu0 %v1617, 127
    %v1640 = vpop.permute.xlu0 %1639
    %1641 = vrot.lane.b32.xlu0 %v1618, 127
    %v1642 = vpop.permute.xlu0 %1641
    %v1651 = vadd.f32 %v1601, %v1628
    %v1652 = vadd.f32 %v1602, %v1630
    %v1653 = vadd.f32 %v1603, %v1632
    %v1654 = vadd.f32 %v1604, %v1634
    %v1655 = vadd.f32 %v1605, %v1636
    %v1656 = vadd.f32 %v1606, %v1638
    %v1657 = vadd.f32 %v1607, %v1640
    %v1658 = vadd.f32 %v1608, %v1642
    %s1659 = sld [smem:[#allocation9 + $0x8]]
    %v1660 = vstv %s1659
    %v1661 = vmul.f32 %v1471, %v1660
    %v1662 = vmul.f32 %v1472, %v1660
    %v1663 = vmul.f32 %v1473, %v1660
    %v1664 = vmul.f32 %v1474, %v1660
    %v1665 = vmul.f32 %v1475, %v1660
    %v1666 = vmul.f32 %v1476, %v1660
    %v1667 = vmul.f32 %v1477, %v1660
    %v1668 = vmul.f32 %v1478, %v1660
    %1677 = vrot.lane.b32.xlu0 %v1661, 126
    %v1678 = vpop.permute.xlu0 %1677
    %1679 = vrot.lane.b32.xlu0 %v1662, 126
    %v1680 = vpop.permute.xlu0 %1679
    %1681 = vrot.lane.b32.xlu0 %v1663, 126
    %v1682 = vpop.permute.xlu0 %1681
    %1683 = vrot.lane.b32.xlu0 %v1664, 126
    %v1684 = vpop.permute.xlu0 %1683
    %1685 = vrot.lane.b32.xlu0 %v1665, 126
    %v1686 = vpop.permute.xlu0 %1685
    %1687 = vrot.lane.b32.xlu0 %v1666, 126
    %v1688 = vpop.permute.xlu0 %1687
    %1689 = vrot.lane.b32.xlu0 %v1667, 126
    %v1690 = vpop.permute.xlu0 %1689
    %1691 = vrot.lane.b32.xlu0 %v1668, 126
    %v1692 = vpop.permute.xlu0 %1691
    %v1701 = vadd.f32 %v1651, %v1678
    %v1702 = vadd.f32 %v1652, %v1680
    %v1703 = vadd.f32 %v1653, %v1682
    %v1704 = vadd.f32 %v1654, %v1684
    %v1705 = vadd.f32 %v1655, %v1686
    %v1706 = vadd.f32 %v1656, %v1688
    %v1707 = vadd.f32 %v1657, %v1690
    %v1708 = vadd.f32 %v1658, %v1692
    %s1709 = sld [smem:[#allocation9 + $0xa]]
    %v1710 = vstv %s1709
    %v1711 = vadd.f32 %v1701, %v1710
    %v1712 = vadd.f32 %v1702, %v1710
    %v1713 = vadd.f32 %v1703, %v1710
    %v1714 = vadd.f32 %v1704, %v1710
    %v1715 = vadd.f32 %v1705, %v1710
    %v1716 = vadd.f32 %v1706, %v1710
    %v1717 = vadd.f32 %v1707, %v1710
    %v1718 = vadd.f32 %v1708, %v1710
    %v1719 = vmax.f32 %v1591, %v1711
    %v1720 = vmax.f32 %v1592, %v1712
    %v1721 = vmax.f32 %v1593, %v1713
    %v1722 = vmax.f32 %v1594, %v1714
    %v1723 = vmax.f32 %v1595, %v1715
    %v1724 = vmax.f32 %v1596, %v1716
    %v1725 = vmax.f32 %v1597, %v1717
    %v1726 = vmax.f32 %v1598, %v1718
    %v1727 = vsub.f32 %v1591, %v1719
    %v1728 = vsub.f32 %v1592, %v1720
    %v1729 = vsub.f32 %v1593, %v1721
    %v1730 = vsub.f32 %v1594, %v1722
    %v1731 = vsub.f32 %v1595, %v1723
    %v1732 = vsub.f32 %v1596, %v1724
    %v1733 = vsub.f32 %v1597, %v1725
    %v1734 = vsub.f32 %v1598, %v1726
    %v1735 = vmul.f32 %v1727, 1.442695
    %v1736 = vpow.pop %v1735
    %v1737 = vmul.f32 %v1728, 1.442695
    %v1738 = vpow.pop %v1737
    %v1739 = vmul.f32 %v1729, 1.442695
    %v1740 = vpow.pop %v1739
    %v1741 = vmul.f32 %v1730, 1.442695
    %v1742 = vpow.pop %v1741
    %v1743 = vmul.f32 %v1731, 1.442695
    %v1744 = vpow.pop %v1743
    %v1745 = vmul.f32 %v1732, 1.442695
    %v1746 = vpow.pop %v1745
    %v1747 = vmul.f32 %v1733, 1.442695
    %v1748 = vpow.pop %v1747
    %v1749 = vmul.f32 %v1734, 1.442695
    %v1750 = vpow.pop %v1749
    %v1751 = vsub.f32 %v1711, %v1719
    %v1752 = vsub.f32 %v1712, %v1720
    %v1753 = vsub.f32 %v1713, %v1721
    %v1754 = vsub.f32 %v1714, %v1722
    %v1755 = vsub.f32 %v1715, %v1723
    %v1756 = vsub.f32 %v1716, %v1724
    %v1757 = vsub.f32 %v1717, %v1725
    %v1758 = vsub.f32 %v1718, %v1726
    %v1759 = vmul.f32 %v1751, 1.442695
    %v1760 = vpow.pop %v1759
    %v1761 = vmul.f32 %v1752, 1.442695
    %v1762 = vpow.pop %v1761
    %v1763 = vmul.f32 %v1753, 1.442695
    %v1764 = vpow.pop %v1763
    %v1765 = vmul.f32 %v1754, 1.442695
    %v1766 = vpow.pop %v1765
    %v1767 = vmul.f32 %v1755, 1.442695
    %v1768 = vpow.pop %v1767
    %v1769 = vmul.f32 %v1756, 1.442695
    %v1770 = vpow.pop %v1769
    %v1771 = vmul.f32 %v1757, 1.442695
    %v1772 = vpow.pop %v1771
    %v1773 = vmul.f32 %v1758, 1.442695
    %v1774 = vpow.pop %v1773
    %v1775 = vadd.f32 %v1736, %v1760
    %v1776 = vadd.f32 %v1738, %v1762
    %v1777 = vadd.f32 %v1740, %v1764
    %v1778 = vadd.f32 %v1742, %v1766
    %v1779 = vadd.f32 %v1744, %v1768
    %v1780 = vadd.f32 %v1746, %v1770
    %v1781 = vadd.f32 %v1748, %v1772
    %v1782 = vadd.f32 %v1750, %v1774
    %v1783 = vrcp.pop %v1775
    %v1784 = vmul.f32 1.0, %v1783
    %v1785 = vrcp.pop %v1776
    %v1786 = vmul.f32 1.0, %v1785
    %v1787 = vrcp.pop %v1777
    %v1788 = vmul.f32 1.0, %v1787
    %v1789 = vrcp.pop %v1778
    %v1790 = vmul.f32 1.0, %v1789
    %v1791 = vrcp.pop %v1779
    %v1792 = vmul.f32 1.0, %v1791
    %v1793 = vrcp.pop %v1780
    %v1794 = vmul.f32 1.0, %v1793
    %v1795 = vrcp.pop %v1781
    %v1796 = vmul.f32 1.0, %v1795
    %v1797 = vrcp.pop %v1782
    %v1798 = vmul.f32 1.0, %v1797
    %vm1799 = vcmp.eq.s32.totalorder %v1339, 0
    %v1800 = vmul.f32 %v1736, %v1784
    %v1801 = vmul.f32 %v1738, %v1786
    %v1802 = vmul.f32 %v1740, %v1788
    %v1803 = vmul.f32 %v1742, %v1790
    %v1804 = vmul.f32 %v1744, %v1792
    %v1805 = vmul.f32 %v1746, %v1794
    %v1806 = vmul.f32 %v1748, %v1796
    %v1807 = vmul.f32 %v1750, %v1798
    %vm1808 = vcmp.eq.s32.totalorder %v1339, 1
    %v1809 = vmul.f32 %v1760, %v1784
    %v1810 = vmul.f32 %v1762, %v1786
    %v1811 = vmul.f32 %v1764, %v1788
    %v1812 = vmul.f32 %v1766, %v1790
    %v1813 = vmul.f32 %v1768, %v1792
    %v1814 = vmul.f32 %v1770, %v1794
    %v1815 = vmul.f32 %v1772, %v1796
    %v1816 = vmul.f32 %v1774, %v1798
    %1818 = vset.pattern.permute.xlu0 0
    %1819 = vperm.xlu0 %1818, %v1809
    %v1820 = vpop.permute.xlu0 %1819
    %1822 = vset.pattern.permute.xlu0 0
    %1823 = vperm.xlu0 %1822, %v1810
    %v1824 = vpop.permute.xlu0 %1823
    %1826 = vset.pattern.permute.xlu0 0
    %1827 = vperm.xlu0 %1826, %v1811
    %v1828 = vpop.permute.xlu0 %1827
    %1830 = vset.pattern.permute.xlu0 0
    %1831 = vperm.xlu0 %1830, %v1812
    %v1832 = vpop.permute.xlu0 %1831
    %1834 = vset.pattern.permute.xlu0 0
    %1835 = vperm.xlu0 %1834, %v1813
    %v1836 = vpop.permute.xlu0 %1835
    %1838 = vset.pattern.permute.xlu0 0
    %1839 = vperm.xlu0 %1838, %v1814
    %v1840 = vpop.permute.xlu0 %1839
    %1842 = vset.pattern.permute.xlu0 0
    %1843 = vperm.xlu0 %1842, %v1815
    %v1844 = vpop.permute.xlu0 %1843
    %1846 = vset.pattern.permute.xlu0 0
    %1847 = vperm.xlu0 %1846, %v1816
    %v1848 = vpop.permute.xlu0 %1847
    %v1849 = vrot.slane %v1824, 7
    %vm1850 = vcmask 1041409
    %v1851 = vsel %vm1850, %v1849, %v1820
    %v1852 = vrot.slane %v1828, 6
    %vm1853 = vcmask 1042434
    %v1854 = vsel %vm1853, %v1852, %v1851
    %v1855 = vrot.slane %v1832, 5
    %vm1856 = vcmask 1043459
    %v1857 = vsel %vm1856, %v1855, %v1854
    %v1858 = vrot.slane %v1836, 4
    %vm1859 = vcmask 1044484
    %v1860 = vsel %vm1859, %v1858, %v1857
    %v1861 = vrot.slane %v1840, 3
    %vm1862 = vcmask 1045509
    %v1863 = vsel %vm1862, %v1861, %v1860
    %v1864 = vrot.slane %v1844, 2
    %vm1865 = vcmask 1046534
    %v1866 = vsel %vm1865, %v1864, %v1863
    %v1867 = vrot.slane %v1848, 1
    %vm1868 = vcmask 1047559
    %v1869 = vsel %vm1868, %v1867, %v1866
    %v1871 = vsel %vm1808, %v1869, 0.0
    %1873 = vset.pattern.permute.xlu0 0
    %1874 = vperm.xlu0 %1873, %v1800
    %v1875 = vpop.permute.xlu0 %1874
    %1877 = vset.pattern.permute.xlu0 0
    %1878 = vperm.xlu0 %1877, %v1801
    %v1879 = vpop.permute.xlu0 %1878
    %1881 = vset.pattern.permute.xlu0 0
    %1882 = vperm.xlu0 %1881, %v1802
    %v1883 = vpop.permute.xlu0 %1882
    %1885 = vset.pattern.permute.xlu0 0
    %1886 = vperm.xlu0 %1885, %v1803
    %v1887 = vpop.permute.xlu0 %1886
    %1889 = vset.pattern.permute.xlu0 0
    %1890 = vperm.xlu0 %1889, %v1804
    %v1891 = vpop.permute.xlu0 %1890
    %1893 = vset.pattern.permute.xlu0 0
    %1894 = vperm.xlu0 %1893, %v1805
    %v1895 = vpop.permute.xlu0 %1894
    %1897 = vset.pattern.permute.xlu0 0
    %1898 = vperm.xlu0 %1897, %v1806
    %v1899 = vpop.permute.xlu0 %1898
    %1901 = vset.pattern.permute.xlu0 0
    %1902 = vperm.xlu0 %1901, %v1807
    %v1903 = vpop.permute.xlu0 %1902
    %v1904 = vrot.slane %v1879, 7
    %v1905 = vsel %vm1850, %v1904, %v1875
    %v1906 = vrot.slane %v1883, 6
    %v1907 = vsel %vm1853, %v1906, %v1905
    %v1908 = vrot.slane %v1887, 5
    %v1909 = vsel %vm1856, %v1908, %v1907
    %v1910 = vrot.slane %v1891, 4
    %v1911 = vsel %vm1859, %v1910, %v1909
    %v1912 = vrot.slane %v1895, 3
    %v1913 = vsel %vm1862, %v1912, %v1911
    %v1914 = vrot.slane %v1899, 2
    %v1915 = vsel %vm1865, %v1914, %v1913
    %v1916 = vrot.slane %v1903, 1
    %v1917 = vsel %vm1868, %v1916, %v1915
    %v1919 = vsel %vm1799, %v1917, %v1871
    %1920 = vst [vmem:[#allocation10] sm:$0xff] %v1919
    // Predicated region
    $region38: #{tpu_custom_call.1} parent=1 // pred_check
      _
    $region39: #{tpu_custom_call.1} parent=1 // pred_check_branch
      %1922 = sbr.rel (0) target = $region41
    $region40: #{tpu_custom_call.1} parent=1 // pred_region
      %s1924 = ssub.s32 128, 128
      %1925 = vsyncadd [#allocation4], %s1924
      %s1927 = sshll.u32 [#allocation10], 4
      %s1928 = int_to_ptr.vmem [resolvable:$true] %s1927
      %1930 = dma.vmem_to_hbm [thread:$0]  %s1928, 128, %s5, [#allocation4]
    $region41: #{tpu_custom_call.1} parent=1 // pred_fallthru
      _
    // Predicated region
    $region42: #{tpu_custom_call.1} parent=1 // pred_check
      _
    $region43: #{tpu_custom_call.1} parent=1 // pred_check_branch
      %1932 = sbr.rel (0) target = $region45
    $region44: #{tpu_custom_call.1} parent=1 // pred_region
      %1933 = dma.done [#allocation4], 128
    $region45: #{tpu_custom_call.1} parent=1 // pred_fallthru
      _
    %1934 = vsyncpa [#allocation3], 1
    %1935 = vsyncpa [#allocation7], 1
    %1936 = vsyncpa [#allocation4], 1
    %1937 = vsyncpa [#allocation5], 1

</llo_original>
